<compile_context>
chip_gen: v7x
topology: tpu7x:2x2x1
jax: 0.10.0
libtpu: 0.0.40
codegen_flags: <defaults>
</compile_context>

<pallas_src>
import functools
import math

import jax
import jax.numpy as jnp
from jax.experimental import pallas as pl
from jax.experimental.pallas import tpu as pltpu


def _attn_adj_kernel(x_ref, mask_ref, w_ref, b_ref, attn_ref, q_ref, *,
                     head_count):
    """One batch element: full linear + all heads' masked flattened softmax.

    x_ref    : (1, S, D)   src rows for this batch element           (VMEM)
    mask_ref : (1, S, S)   ADDITIVE mask (0 kept / -1e18 masked)     (VMEM)
    w_ref    : (D, D)      weight^T, pre-scaled by dh**-0.25         (VMEM)
    b_ref    : (1, D)      bias, pre-scaled by dh**-0.25             (VMEM)
    attn_ref : (1, H, S, S) output attention block                   (VMEM)
    q_ref    : (S, D)      f32 scratch staging the linear output     (VMEM)
    """
    D = x_ref.shape[2]
    dh = D // head_count

    # Fused full-width linear: one lane-dense (S,D)x(D,D) MXU matmul.
    # Because dh**-0.25 is folded into w/b, q @ q^T already carries the
    # 1/sqrt(dh) score scaling.
    q_ref[...] = (
        jnp.dot(x_ref[0], w_ref[...], preferred_element_type=jnp.float32)
        + b_ref[...])

    for h in range(head_count):  # static unroll; no cross-head carries
        qh = q_ref[:, h * dh:(h + 1) * dh]                            # (S, dh)
        # scores = q_h @ q_h^T (key is the unscaled copy of the query);
        # dot_general contracting the last dims avoids an explicit transpose.
        scores = jax.lax.dot_general(
            qh, qh, (((1,), (1,)), ((), ())),
            preferred_element_type=jnp.float32)                       # (S, S)

        # Additive mask: single vadd instead of cmp+select.
        scores = scores + mask_ref[0]

        # Softmax over the *flattened* S*S slab (matches scores.view(..., -1)).
        m = jnp.max(scores, keepdims=True)                            # (1, 1)
        p = jnp.exp(scores - m)
        # EUP approximate reciprocal (free slot) + fused normalize/symmetrize.
        inv = pl.reciprocal(jnp.sum(p, keepdims=True), approx=True)   # (1, 1)
        attn_ref[0, h] = ((p + p.T) * inv).astype(attn_ref.dtype)


def prepare_mha_params(weight, bias, head_count, compute_dtype=jnp.float32):
    """One-time parameter prep; keeps transpose/scale/cast off the hot path.

    weight: (D, D) PyTorch nn.Linear layout (out_features, in_features)
    bias:   (D,)
    Returns (w_t, b) with the dh**-0.25 score scaling folded in:
      w_t: (D, D) = weight.T * dh**-0.25  (so x @ w_t == scaled linear output)
      b  : (1, D) = bias     * dh**-0.25
    """
    D = weight.shape[0]
    dh = D // head_count
    scale = float(dh) ** -0.25
    w_t = (jnp.asarray(weight).T * scale).astype(compute_dtype)
    b = (jnp.asarray(bias) * scale).astype(jnp.float32).reshape(1, D)
    return w_t, b


def prepare_additive_mask(mask):
    """Precompute (once) the additive mask: 0 where kept, -1e18 where masked."""
    return jnp.where(mask, jnp.float32(-1e18), jnp.float32(0.0))


def multihead_attention_adj(src, mask_add, w_t, b, head_count):
    """Pallas forward of MultiheadAttentionADJ.forward: returns (src, attn)."""
    B, S, D = src.shape
    assert w_t.shape == (D, D) and b.shape == (1, D) and D % head_count == 0
    assert mask_add.shape == (B, S, S)

    # bf16 path: weights were pre-cast in prepare_mha_params; cast src once
    # here (no per-step in-kernel packing).  Demo uses f32 so this is a no-op.
    x = src.astype(w_t.dtype) if src.dtype != w_t.dtype else src

    kernel = functools.partial(_attn_adj_kernel, head_count=head_count)

    # VMEM per grid step (double-buffered): src 2*S*D*4 + mask 2*S*S*4 +
    # weight 2*D*D*4 + out 2*H*S*S*4 + q scratch S*D*4  ~= 1 MiB for the demo
    # shapes -> far below the scoped default on v5e/v6e/v7x.
    # TODO(synk): for production chemprop sizes (hidden=300), pad S/D to
    # multiples of (8, 128) offline and slice the attention output.
    attn = pl.pallas_call(
        kernel,
        out_shape=jax.ShapeDtypeStruct((B, head_count, S, S), jnp.float32),
        grid_spec=pltpu.PrefetchScalarGridSpec(
            num_scalar_prefetch=0,
            grid=(B,),  # B >= 2 parallel steps -> both v7x TensorCores busy
            in_specs=[
                pl.BlockSpec((1, S, D), lambda i: (i, 0, 0)),   # src rows
                pl.BlockSpec((1, S, S), lambda i: (i, 0, 0)),   # additive mask
                pl.BlockSpec((D, D), lambda i: (0, 0)),         # weight^T
                pl.BlockSpec((1, D), lambda i: (0, 0)),         # bias
            ],
            out_specs=pl.BlockSpec((1, head_count, S, S),
                                   lambda i: (i, 0, 0, 0)),
            scratch_shapes=[pltpu.VMEM((S, D), jnp.float32)],   # q staging
        ),
        compiler_params=pltpu.CompilerParams(
            dimension_semantics=("parallel",)),
    )(x, mask_add, w_t, b)

    return src, attn


def attn_encoder_adj_forward(src, mask_add, A, layer_params, head_count):
    """AttnEncoderADJ.forward.

    The PyTorch loop passes the ORIGINAL `src` to every layer and discards all
    but the last layer's (out, attn), so only the final layer's parameters
    contribute; we compute exactly that.
    `mask_add` is the precomputed additive mask from prepare_additive_mask.
    """
    del A  # accepted by the PyTorch forward but never used
    w_t, b = layer_params[-1]
    return multihead_attention_adj(src, mask_add, w_t, b, head_count)


# ----------------------------- pure-JAX reference -----------------------------

def attn_encoder_adj_reference(src, mask, weight, bias, head_count):
    B, S, D = src.shape
    dh = D // head_count
    q = src @ weight.T + bias
    qh = jnp.transpose(q.reshape(B, S, head_count, dh), (0, 2, 1, 3))
    kh = qh
    qh = qh / math.sqrt(dh)
    scores = jnp.einsum('bhqd,bhkd->bhqk', qh, kh).astype(jnp.float32)
    scores = jnp.where(mask[:, None, :, :], jnp.float32(-1e18), scores)
    flat = scores.reshape(B, head_count, S * S)
    attn = jax.nn.softmax(flat, axis=-1).reshape(B, head_count, S, S)
    attn = attn + jnp.swapaxes(attn, -1, -2)
    return src, attn


if __name__ == "__main__":
    key = jax.random.PRNGKey(0)
    k_x, k_m, k_w, k_b = jax.random.split(key, 4)

    # Small but lane-dense demo shapes (node blocks x hidden).
    B, S, D, H = 2, 128, 128, 4
    num_layers = 2

    src = jax.random.normal(k_x, (B, S, D), dtype=jnp.float32)
    mask = jax.random.bernoulli(k_m, 0.3, (B, S, S))       # True == masked
    A = jnp.zeros((B, S, S), dtype=jnp.float32)            # unused by module

    bound = 1.0 / math.sqrt(D)
    raw_params, layer_params = [], []
    for _ in range(num_layers):
        k_w, k_wl = jax.random.split(k_w)
        k_b, k_bl = jax.random.split(k_b)
        weight = jax.random.uniform(k_wl, (D, D), minval=-bound, maxval=bound,
                                    dtype=jnp.float32)
        bias = jax.random.uniform(k_bl, (D,), minval=-bound, maxval=bound,
                                  dtype=jnp.float32)
        raw_params.append((weight, bias))
        layer_params.append(prepare_mha_params(weight, bias, H))

    # Additive mask is prepared ONCE, off the per-call hot path.
    mask_add = prepare_additive_mask(mask)

    out, attn = attn_encoder_adj_forward(src, mask_add, A, layer_params, H)
    out = jax.block_until_ready(out)
    attn = jax.block_until_ready(attn)

    ref_out, ref_attn = attn_encoder_adj_reference(src, mask, *raw_params[-1], H)
    assert out.shape == (B, S, D) and attn.shape == (B, H, S, S)
    assert jnp.allclose(out, ref_out), "src passthrough mismatch"
    max_err = float(jnp.max(jnp.abs(attn - ref_attn)))
    # Tolerance accommodates the folded dh**-0.25 scaling and the EUP
    # approximate reciprocal (both well below 1% relative on these values).
    assert jnp.allclose(attn, ref_attn, atol=1e-5, rtol=1e-2), (
        f"attn mismatch, max abs err {max_err}")

    print("KERNEL_OK")
</pallas_src>

<mosaic_0001>
module attributes {stable_mosaic.version = 11 : i64} {
  func.func @_attn_adj_kernel(%arg0: i32, %arg1: memref<1x128x128xf32, #tpu.memory_space<vmem>>, %arg2: memref<1x128x128xf32, #tpu.memory_space<vmem>>, %arg3: memref<128x128xf32, #tpu.memory_space<vmem>>, %arg4: memref<1x128xf32, #tpu.memory_space<vmem>>, %arg5: memref<1x4x128x128xf32, #tpu.memory_space<vmem>>, %arg6: memref<128x128xf32, #tpu.memory_space<vmem>>) attributes {dimension_semantics = [#tpu.dimension_semantics<parallel>], iteration_bounds = array<i64: 2>, scalar_prefetch = 0 : i64, scratch_operands = 1 : i64, tpu.core_type = #tpu.core_type<tc>, window_params = [{transform_indices = @transform_0, window_bounds = array<i64: 1, 128, 128>}, {transform_indices = @transform_1, window_bounds = array<i64: 1, 128, 128>}, {pipeline_mode = #tpu.pipeline_mode<synchronous>, transform_indices = @transform_2, window_bounds = array<i64: 128, 128>}, {pipeline_mode = #tpu.pipeline_mode<synchronous>, transform_indices = @transform_3, window_bounds = array<i64: 1, 128>}, {transform_indices = @transform_4, window_bounds = array<i64: 1, 4, 128, 128>}]} {
    %c0 = arith.constant 0 : index
    %c0_0 = arith.constant 0 : index
    %c0_1 = arith.constant 0 : index
    %0 = vector.load %arg1[%c0, %c0_0, %c0_1] : memref<1x128x128xf32, #tpu.memory_space<vmem>>, vector<1x128x128xf32>
    %1 = vector.shape_cast %0 : vector<1x128x128xf32> to vector<128x128xf32>
    %c0_2 = arith.constant 0 : index
    %c0_3 = arith.constant 0 : index
    %2 = vector.load %arg3[%c0_2, %c0_3] : memref<128x128xf32, #tpu.memory_space<vmem>>, vector<128x128xf32>
    %cst = arith.constant dense<0.000000e+00> : vector<128x128xf32>
    %3 = tpu.matmul %1, %2, %cst {dimension_numbers = #tpu.dot_dimension_numbers<[1], [0], [0], [1], [0, 0, 1, 1], [], []>} : vector<128x128xf32>, vector<128x128xf32>, vector<128x128xf32> -> vector<128x128xf32>
    %c0_4 = arith.constant 0 : index
    %c0_5 = arith.constant 0 : index
    %4 = vector.load %arg4[%c0_4, %c0_5] : memref<1x128xf32, #tpu.memory_space<vmem>>, vector<1x128xf32>
    %5 = vector.broadcast %4 : vector<1x128xf32> to vector<128x128xf32>
    %6 = arith.addf %3, %5 : vector<128x128xf32>
    %c0_6 = arith.constant 0 : index
    %c0_7 = arith.constant 0 : index
    %7 = vector.load %arg6[%c0_6, %c0_7] : memref<128x128xf32, #tpu.memory_space<vmem>>, vector<128x128xf32>
    tpu.vector_store %arg6[%c0_6, %c0_7], %6 {strides = array<i32>} : memref<128x128xf32, #tpu.memory_space<vmem>>, vector<128x128xf32>,
    %c0_8 = arith.constant 0 : index
    %c0_9 = arith.constant 0 : index
    %8 = vector.load %arg6[%c0_8, %c0_9] : memref<128x128xf32, #tpu.memory_space<vmem>>, vector<128x32xf32>
    %cst_10 = arith.constant dense<0.000000e+00> : vector<128x128xf32>
    %9 = tpu.matmul %8, %8, %cst_10 {dimension_numbers = #tpu.dot_dimension_numbers<[1], [1], [0], [0], [0, 0, 1, 0], [], []>} : vector<128x32xf32>, vector<128x32xf32>, vector<128x128xf32> -> vector<128x128xf32>
    %c0_11 = arith.constant 0 : index
    %c0_12 = arith.constant 0 : index
    %c0_13 = arith.constant 0 : index
    %10 = vector.load %arg2[%c0_11, %c0_12, %c0_13] : memref<1x128x128xf32, #tpu.memory_space<vmem>>, vector<1x128x128xf32>
    %11 = vector.shape_cast %10 : vector<1x128x128xf32> to vector<128x128xf32>
    %12 = arith.addf %9, %11 : vector<128x128xf32>
    %13 = vector.shape_cast %12 : vector<128x128xf32> to vector<1x128x128xf32>
    %cst_14 = arith.constant dense<0xFF800000> : vector<1xf32>
    %14 = vector.multi_reduction <maximumf>, %13, %cst_14 [1, 2] : vector<1x128x128xf32> to vector<1xf32>
    %15 = vector.shape_cast %14 : vector<1xf32> to vector<1x1x1xf32>
    %16 = vector.extract %15[0, 0, 0] : f32 from vector<1x1x1xf32>
    %17 = vector.broadcast %16 : f32 to vector<1x1xf32>
    %18 = vector.broadcast %17 : vector<1x1xf32> to vector<128x128xf32>
    %19 = arith.subf %12, %18 : vector<128x128xf32>
    %20 = math.exp %19 : vector<128x128xf32>
    %21 = vector.shape_cast %20 : vector<128x128xf32> to vector<1x128x128xf32>
    %cst_15 = arith.constant dense<0.000000e+00> : vector<1xf32>
    %22 = vector.multi_reduction <add>, %21, %cst_15 [1, 2] : vector<1x128x128xf32> to vector<1xf32>
    %23 = vector.shape_cast %22 : vector<1xf32> to vector<1x1x1xf32>
    %24 = vector.extract %23[0, 0, 0] : f32 from vector<1x1x1xf32>
    %25 = vector.broadcast %24 : f32 to vector<1x1xf32>
    %26 = tpu.reciprocal %25 {approx = true} : vector<1x1xf32> -> vector<1x1xf32>
    %27 = tpu.transpose %20, [1, 0] : vector<128x128xf32> -> vector<128x128xf32>
    %28 = arith.addf %20, %27 : vector<128x128xf32>
    %29 = vector.broadcast %26 : vector<1x1xf32> to vector<128x128xf32>
    %30 = arith.mulf %28, %29 : vector<128x128xf32>
    %c0_16 = arith.constant 0 : index
    %c0_17 = arith.constant 0 : index
    %c0_18 = arith.constant 0 : index
    %c0_19 = arith.constant 0 : index
    %31 = vector.load %arg5[%c0_16, %c0_17, %c0_18, %c0_19] : memref<1x4x128x128xf32, #tpu.memory_space<vmem>>, vector<1x1x128x128xf32>
    %32 = vector.shape_cast %31 : vector<1x1x128x128xf32> to vector<128x128xf32>
    %33 = vector.shape_cast %30 : vector<128x128xf32> to vector<1x1x128x128xf32>
    tpu.vector_store %arg5[%c0_16, %c0_17, %c0_18, %c0_19], %33 {strides = array<i32>} : memref<1x4x128x128xf32, #tpu.memory_space<vmem>>, vector<1x1x128x128xf32>,
    %c0_20 = arith.constant 0 : index
    %c32 = arith.constant 32 : index
    %34 = vector.load %arg6[%c0_20, %c32] : memref<128x128xf32, #tpu.memory_space<vmem>>, vector<128x32xf32>
    %cst_21 = arith.constant dense<0.000000e+00> : vector<128x128xf32>
    %35 = tpu.matmul %34, %34, %cst_21 {dimension_numbers = #tpu.dot_dimension_numbers<[1], [1], [0], [0], [0, 0, 1, 0], [], []>} : vector<128x32xf32>, vector<128x32xf32>, vector<128x128xf32> -> vector<128x128xf32>
    %c0_22 = arith.constant 0 : index
    %c0_23 = arith.constant 0 : index
    %c0_24 = arith.constant 0 : index
    %36 = vector.load %arg2[%c0_22, %c0_23, %c0_24] : memref<1x128x128xf32, #tpu.memory_space<vmem>>, vector<1x128x128xf32>
    %37 = vector.shape_cast %36 : vector<1x128x128xf32> to vector<128x128xf32>
    %38 = arith.addf %35, %37 : vector<128x128xf32>
    %39 = vector.shape_cast %38 : vector<128x128xf32> to vector<1x128x128xf32>
    %cst_25 = arith.constant dense<0xFF800000> : vector<1xf32>
    %40 = vector.multi_reduction <maximumf>, %39, %cst_25 [1, 2] : vector<1x128x128xf32> to vector<1xf32>
    %41 = vector.shape_cast %40 : vector<1xf32> to vector<1x1x1xf32>
    %42 = vector.extract %41[0, 0, 0] : f32 from vector<1x1x1xf32>
    %43 = vector.broadcast %42 : f32 to vector<1x1xf32>
    %44 = vector.broadcast %43 : vector<1x1xf32> to vector<128x128xf32>
    %45 = arith.subf %38, %44 : vector<128x128xf32>
    %46 = math.exp %45 : vector<128x128xf32>
    %47 = vector.shape_cast %46 : vector<128x128xf32> to vector<1x128x128xf32>
    %cst_26 = arith.constant dense<0.000000e+00> : vector<1xf32>
    %48 = vector.multi_reduction <add>, %47, %cst_26 [1, 2] : vector<1x128x128xf32> to vector<1xf32>
    %49 = vector.shape_cast %48 : vector<1xf32> to vector<1x1x1xf32>
    %50 = vector.extract %49[0, 0, 0] : f32 from vector<1x1x1xf32>
    %51 = vector.broadcast %50 : f32 to vector<1x1xf32>
    %52 = tpu.reciprocal %51 {approx = true} : vector<1x1xf32> -> vector<1x1xf32>
    %53 = tpu.transpose %46, [1, 0] : vector<128x128xf32> -> vector<128x128xf32>
    %54 = arith.addf %46, %53 : vector<128x128xf32>
    %55 = vector.broadcast %52 : vector<1x1xf32> to vector<128x128xf32>
    %56 = arith.mulf %54, %55 : vector<128x128xf32>
    %c0_27 = arith.constant 0 : index
    %c1 = arith.constant 1 : index
    %c0_28 = arith.constant 0 : index
    %c0_29 = arith.constant 0 : index
    %57 = vector.load %arg5[%c0_27, %c1, %c0_28, %c0_29] : memref<1x4x128x128xf32, #tpu.memory_space<vmem>>, vector<1x1x128x128xf32>
    %58 = vector.shape_cast %57 : vector<1x1x128x128xf32> to vector<128x128xf32>
    %59 = vector.shape_cast %56 : vector<128x128xf32> to vector<1x1x128x128xf32>
    tpu.vector_store %arg5[%c0_27, %c1, %c0_28, %c0_29], %59 {strides = array<i32>} : memref<1x4x128x128xf32, #tpu.memory_space<vmem>>, vector<1x1x128x128xf32>,
    %c0_30 = arith.constant 0 : index
    %c64 = arith.constant 64 : index
    %60 = vector.load %arg6[%c0_30, %c64] : memref<128x128xf32, #tpu.memory_space<vmem>>, vector<128x32xf32>
    %cst_31 = arith.constant dense<0.000000e+00> : vector<128x128xf32>
    %61 = tpu.matmul %60, %60, %cst_31 {dimension_numbers = #tpu.dot_dimension_numbers<[1], [1], [0], [0], [0, 0, 1, 0], [], []>} : vector<128x32xf32>, vector<128x32xf32>, vector<128x128xf32> -> vector<128x128xf32>
    %c0_32 = arith.constant 0 : index
    %c0_33 = arith.constant 0 : index
    %c0_34 = arith.constant 0 : index
    %62 = vector.load %arg2[%c0_32, %c0_33, %c0_34] : memref<1x128x128xf32, #tpu.memory_space<vmem>>, vector<1x128x128xf32>
    %63 = vector.shape_cast %62 : vector<1x128x128xf32> to vector<128x128xf32>
    %64 = arith.addf %61, %63 : vector<128x128xf32>
    %65 = vector.shape_cast %64 : vector<128x128xf32> to vector<1x128x128xf32>
    %cst_35 = arith.constant dense<0xFF800000> : vector<1xf32>
    %66 = vector.multi_reduction <maximumf>, %65, %cst_35 [1, 2] : vector<1x128x128xf32> to vector<1xf32>
    %67 = vector.shape_cast %66 : vector<1xf32> to vector<1x1x1xf32>
    %68 = vector.extract %67[0, 0, 0] : f32 from vector<1x1x1xf32>
    %69 = vector.broadcast %68 : f32 to vector<1x1xf32>
    %70 = vector.broadcast %69 : vector<1x1xf32> to vector<128x128xf32>
    %71 = arith.subf %64, %70 : vector<128x128xf32>
    %72 = math.exp %71 : vector<128x128xf32>
    %73 = vector.shape_cast %72 : vector<128x128xf32> to vector<1x128x128xf32>
    %cst_36 = arith.constant dense<0.000000e+00> : vector<1xf32>
    %74 = vector.multi_reduction <add>, %73, %cst_36 [1, 2] : vector<1x128x128xf32> to vector<1xf32>
    %75 = vector.shape_cast %74 : vector<1xf32> to vector<1x1x1xf32>
    %76 = vector.extract %75[0, 0, 0] : f32 from vector<1x1x1xf32>
    %77 = vector.broadcast %76 : f32 to vector<1x1xf32>
    %78 = tpu.reciprocal %77 {approx = true} : vector<1x1xf32> -> vector<1x1xf32>
    %79 = tpu.transpose %72, [1, 0] : vector<128x128xf32> -> vector<128x128xf32>
    %80 = arith.addf %72, %79 : vector<128x128xf32>
    %81 = vector.broadcast %78 : vector<1x1xf32> to vector<128x128xf32>
    %82 = arith.mulf %80, %81 : vector<128x128xf32>
    %c0_37 = arith.constant 0 : index
    %c2 = arith.constant 2 : index
    %c0_38 = arith.constant 0 : index
    %c0_39 = arith.constant 0 : index
    %83 = vector.load %arg5[%c0_37, %c2, %c0_38, %c0_39] : memref<1x4x128x128xf32, #tpu.memory_space<vmem>>, vector<1x1x128x128xf32>
    %84 = vector.shape_cast %83 : vector<1x1x128x128xf32> to vector<128x128xf32>
    %85 = vector.shape_cast %82 : vector<128x128xf32> to vector<1x1x128x128xf32>
    tpu.vector_store %arg5[%c0_37, %c2, %c0_38, %c0_39], %85 {strides = array<i32>} : memref<1x4x128x128xf32, #tpu.memory_space<vmem>>, vector<1x1x128x128xf32>,
    %c0_40 = arith.constant 0 : index
    %c96 = arith.constant 96 : index
    %86 = vector.load %arg6[%c0_40, %c96] : memref<128x128xf32, #tpu.memory_space<vmem>>, vector<128x32xf32>
    %cst_41 = arith.constant dense<0.000000e+00> : vector<128x128xf32>
    %87 = tpu.matmul %86, %86, %cst_41 {dimension_numbers = #tpu.dot_dimension_numbers<[1], [1], [0], [0], [0, 0, 1, 0], [], []>} : vector<128x32xf32>, vector<128x32xf32>, vector<128x128xf32> -> vector<128x128xf32>
    %c0_42 = arith.constant 0 : index
    %c0_43 = arith.constant 0 : index
    %c0_44 = arith.constant 0 : index
    %88 = vector.load %arg2[%c0_42, %c0_43, %c0_44] : memref<1x128x128xf32, #tpu.memory_space<vmem>>, vector<1x128x128xf32>
    %89 = vector.shape_cast %88 : vector<1x128x128xf32> to vector<128x128xf32>
    %90 = arith.addf %87, %89 : vector<128x128xf32>
    %91 = vector.shape_cast %90 : vector<128x128xf32> to vector<1x128x128xf32>
    %cst_45 = arith.constant dense<0xFF800000> : vector<1xf32>
    %92 = vector.multi_reduction <maximumf>, %91, %cst_45 [1, 2] : vector<1x128x128xf32> to vector<1xf32>
    %93 = vector.shape_cast %92 : vector<1xf32> to vector<1x1x1xf32>
    %94 = vector.extract %93[0, 0, 0] : f32 from vector<1x1x1xf32>
    %95 = vector.broadcast %94 : f32 to vector<1x1xf32>
    %96 = vector.broadcast %95 : vector<1x1xf32> to vector<128x128xf32>
    %97 = arith.subf %90, %96 : vector<128x128xf32>
    %98 = math.exp %97 : vector<128x128xf32>
    %99 = vector.shape_cast %98 : vector<128x128xf32> to vector<1x128x128xf32>
    %cst_46 = arith.constant dense<0.000000e+00> : vector<1xf32>
    %100 = vector.multi_reduction <add>, %99, %cst_46 [1, 2] : vector<1x128x128xf32> to vector<1xf32>
    %101 = vector.shape_cast %100 : vector<1xf32> to vector<1x1x1xf32>
    %102 = vector.extract %101[0, 0, 0] : f32 from vector<1x1x1xf32>
    %103 = vector.broadcast %102 : f32 to vector<1x1xf32>
    %104 = tpu.reciprocal %103 {approx = true} : vector<1x1xf32> -> vector<1x1xf32>
    %105 = tpu.transpose %98, [1, 0] : vector<128x128xf32> -> vector<128x128xf32>
    %106 = arith.addf %98, %105 : vector<128x128xf32>
    %107 = vector.broadcast %104 : vector<1x1xf32> to vector<128x128xf32>
    %108 = arith.mulf %106, %107 : vector<128x128xf32>
    %c0_47 = arith.constant 0 : index
    %c3 = arith.constant 3 : index
    %c0_48 = arith.constant 0 : index
    %c0_49 = arith.constant 0 : index
    %109 = vector.load %arg5[%c0_47, %c3, %c0_48, %c0_49] : memref<1x4x128x128xf32, #tpu.memory_space<vmem>>, vector<1x1x128x128xf32>
    %110 = vector.shape_cast %109 : vector<1x1x128x128xf32> to vector<128x128xf32>
    %111 = vector.shape_cast %108 : vector<128x128xf32> to vector<1x1x128x128xf32>
    tpu.vector_store %arg5[%c0_47, %c3, %c0_48, %c0_49], %111 {strides = array<i32>} : memref<1x4x128x128xf32, #tpu.memory_space<vmem>>, vector<1x1x128x128xf32>,
    return
  }
  func.func @transform_0(%arg0: i32) -> (i32, i32, i32) {
    %c0_i32 = arith.constant 0 : i32
    %c0_i32_0 = arith.constant 0 : i32
    %c0_i32_1 = arith.constant 0 : i32
    return %arg0, %c0_i32, %c0_i32_0 : i32, i32, i32
  }
  func.func @transform_1(%arg0: i32) -> (i32, i32, i32) {
    %c0_i32 = arith.constant 0 : i32
    %c0_i32_0 = arith.constant 0 : i32
    %c0_i32_1 = arith.constant 0 : i32
    return %arg0, %c0_i32, %c0_i32_0 : i32, i32, i32
  }
  func.func @transform_2(%arg0: i32) -> (i32, i32) {
    %c0_i32 = arith.constant 0 : i32
    %c0_i32_0 = arith.constant 0 : i32
    %c0_i32_1 = arith.constant 0 : i32
    return %c0_i32, %c0_i32_0 : i32, i32
  }
  func.func @transform_3(%arg0: i32) -> (i32, i32) {
    %c0_i32 = arith.constant 0 : i32
    %c0_i32_0 = arith.constant 0 : i32
    %c0_i32_1 = arith.constant 0 : i32
    return %c0_i32, %c0_i32_0 : i32, i32
  }
  func.func @transform_4(%arg0: i32) -> (i32, i32, i32, i32) {
    %c0_i32 = arith.constant 0 : i32
    %c0_i32_0 = arith.constant 0 : i32
    %c0_i32_1 = arith.constant 0 : i32
    %c0_i32_2 = arith.constant 0 : i32
    return %arg0, %c0_i32, %c0_i32_0, %c0_i32_1 : i32, i32, i32, i32
  }
}

</mosaic_0001>

<llo_original>
// kernel: tpu_custom_call.1
$region0: #{tpu_custom_call.1}
  #allocation0 [shape = 'u32[]', space=smem, size = 0x4, offset = 0x4, fixed_abs, tag = 'smem constant byte address 0x4 - core index']
  #allocation1 [shape = 'u32[144,128]{1,0:T(1,128)}', space=vmem, size = 0x12000, scoped, tag = 'internal scratch']
  #allocation2 [shape = 'f32[128,128]{1,0:T(8,128)}', space=vmem, size = 0x10000, scoped, tag = 'scratch operand']
  %s0 = inlined_call_operand.hbm [shape: f32[2,128,128], index: 0, kind: input, shape index: {}]
  %s1 = inlined_call_operand.hbm [shape: f32[2,128,128], index: 1, kind: input, shape index: {}]
  %s2 = inlined_call_operand.hbm [shape: f32[128,128], index: 2, kind: input, shape index: {}]
  %s3 = inlined_call_operand.vmem [shape: f32[1,128], index: 3, kind: input, shape index: {}]
  %s4 = inlined_call_operand.hbm [shape: f32[2,4,128,128], index: 4, kind: output, shape index: {}]
  %s5 = sld [smem:[#allocation0]]
  $region61: #{tpu_custom_call.1} parent=0
    _
  %s7 = ssub.s32 1, %s5
  %s8 = scalar_select 0, %s7, %s5
  $region1: #{tpu_custom_call.1} parent=0
    #allocation3 [shape = 'u8[131072]{0}', space=vmem, size = 0x20000, scoped, tag = 'input window, operand 0']
    #allocation4 [shape = 's32[2]{0}', space=sflag, size = 0x8, scoped, tag = 'scoped memory for tpu_custom_call.1']
    #allocation5 [shape = 's32[2]{0}', space=sflag, size = 0x8, scoped, tag = 'scoped memory for tpu_custom_call.1']
    #allocation6 [shape = 'u8[131072]{0}', space=vmem, size = 0x20000, scoped, tag = 'input window, operand 1']
    #allocation7 [shape = 's32[2]{0}', space=sflag, size = 0x8, scoped, tag = 'scoped memory for tpu_custom_call.1']
    #allocation8 [shape = 'u8[65536]{0}', space=vmem, size = 0x10000, scoped, tag = 'input window, operand 2, single buffered']
    #allocation9 [shape = 'u8[524288]{0}', space=vmem, size = 0x80000, scoped, tag = 'output window, operand 0']
    %9 = vsyncpa [#allocation4], 0
    %s10 = scalar_lea.sflag [#allocation4], 1
    %11 = vsyncpa %s10, 0
    %12 = vsyncpa [#allocation7], 0
    %s13 = scalar_lea.sflag [#allocation7], 1
    %14 = vsyncpa %s13, 0
    %15 = vsyncpa [#allocation5], 0
    %s16 = scalar_lea.sflag [#allocation5], 1
    %17 = vsyncpa %s16, 0
    loop: start=0, step=1, limit=4
    $region2: #{tpu_custom_call.1} parent=1 // loop_pre_header
      _
    $region3: #{tpu_custom_call.1} parent=1 // loop_header
      %s19 = sphi 0, %s23
      %p20 = scmp.ge.s32.totalorder %s19, 4
      %s29 = sphi 0, %s31
      %s32 = sphi 0, %s29
      %s33 = sphi 0, %s32
      %s49 = sphi 0, %s33
      %s55 = sphi 0, %s57
      %s58 = sphi 0, %s55
      %s59 = sphi 0, %s58
      %s75 = sphi 0, %s59
      %s79 = sphi 0, %s79
      %s81 = sphi 0, %s79
      %s82 = sphi 0, %s81
      %s96 = sphi 0, %s82
      %s100 = sphi 0, %s100
      %s102 = sphi 0, %s100
      %s103 = sphi 0, %s102
      %s117 = sphi 0, %s103
      %s123 = sphi 0, %s125
      %s126 = sphi 0, %s123
      %s127 = sphi 0, %s126
      %s143 = sphi 0, %s127
    $region4: #{tpu_custom_call.1} parent=1 // loop_header_branch
      %22 = sbr.rel (%p20) target = $region8
    $region5: #{tpu_custom_call.1} parent=1 // loop_body
      %s24 = ssub.s32 %s19, 1
      %s25 = ssub.s32 %s19, 2
      %s26 = sadd.s32 %s19, 1
      %s27 = ssub.s32 %s19, %s26
      %p28 = scmp.eq.s32.totalorder %s27, 0
      %s30 = sadd.s32 %s29, 1
      %s31 = scalar_select %p28, %s29, %s30
      %p34 = pneg %p28
      %p35 = scmp.eq.s32.totalorder %s19, 1
      %p36 = por %p34, %p35
      %p37 = scmp.ne.s32.totalorder %s29, %s32
      %p38 = scmp.eq.s32.totalorder %s19, 0
      %p39 = por %p37, %p38
      %p40 = scmp.ne.s32.totalorder %s29, %s32
      %p41 = scmp.eq.s32.totalorder %s24, 1
      %p42 = por %p40, %p41
      %p43 = scmp.ne.s32.totalorder %s32, %s33
      %p44 = scmp.eq.s32.totalorder %s24, 0
      %p45 = por %p43, %p44
      %p46 = scmp.ne.s32.totalorder %s32, %s33
      %p47 = scmp.eq.s32.totalorder %s25, 1
      %p48 = por %p46, %p47
      %p50 = scmp.ne.s32.totalorder %s33, %s49
      %p51 = scmp.eq.s32.totalorder %s25, 0
      %p52 = por %p50, %p51
      %s53 = ssub.s32 %s19, %s26
      %p54 = scmp.eq.s32.totalorder %s53, 0
      %s56 = sadd.s32 %s55, 1
      %s57 = scalar_select %p54, %s55, %s56
      %p60 = pneg %p54
      %p61 = scmp.eq.s32.totalorder %s19, 1
      %p62 = por %p60, %p61
      %p63 = scmp.ne.s32.totalorder %s55, %s58
      %p64 = scmp.eq.s32.totalorder %s19, 0
      %p65 = por %p63, %p64
      %p66 = scmp.ne.s32.totalorder %s55, %s58
      %p67 = scmp.eq.s32.totalorder %s24, 1
      %p68 = por %p66, %p67
      %p69 = scmp.ne.s32.totalorder %s58, %s59
      %p70 = scmp.eq.s32.totalorder %s24, 0
      %p71 = por %p69, %p70
      %p72 = scmp.ne.s32.totalorder %s58, %s59
      %p73 = scmp.eq.s32.totalorder %s25, 1
      %p74 = por %p72, %p73
      %p76 = scmp.ne.s32.totalorder %s59, %s75
      %p77 = scmp.eq.s32.totalorder %s25, 0
      %p78 = por %p76, %p77
      %s80 = sadd.s32 %s79, 1
      %p83 = scmp.eq.s32.totalorder %s19, 1
      %p84 = scmp.ne.s32.totalorder %s79, %s81
      %p85 = scmp.eq.s32.totalorder %s19, 0
      %p86 = por %p84, %p85
      %p87 = scmp.ne.s32.totalorder %s79, %s81
      %p88 = scmp.eq.s32.totalorder %s24, 1
      %p89 = por %p87, %p88
      %p90 = scmp.ne.s32.totalorder %s81, %s82
      %p91 = scmp.eq.s32.totalorder %s24, 0
      %p92 = por %p90, %p91
      %p93 = scmp.ne.s32.totalorder %s81, %s82
      %p94 = scmp.eq.s32.totalorder %s25, 1
      %p95 = por %p93, %p94
      %p97 = scmp.ne.s32.totalorder %s82, %s96
      %p98 = scmp.eq.s32.totalorder %s25, 0
      %p99 = por %p97, %p98
      %s101 = sadd.s32 %s100, 1
      %p104 = scmp.eq.s32.totalorder %s19, 1
      %p105 = scmp.ne.s32.totalorder %s100, %s102
      %p106 = scmp.eq.s32.totalorder %s19, 0
      %p107 = por %p105, %p106
      %p108 = scmp.ne.s32.totalorder %s100, %s102
      %p109 = scmp.eq.s32.totalorder %s24, 1
      %p110 = por %p108, %p109
      %p111 = scmp.ne.s32.totalorder %s102, %s103
      %p112 = scmp.eq.s32.totalorder %s24, 0
      %p113 = por %p111, %p112
      %p114 = scmp.ne.s32.totalorder %s102, %s103
      %p115 = scmp.eq.s32.totalorder %s25, 1
      %p116 = por %p114, %p115
      %p118 = scmp.ne.s32.totalorder %s103, %s117
      %p119 = scmp.eq.s32.totalorder %s25, 0
      %p120 = por %p118, %p119
      %s121 = ssub.s32 %s19, %s26
      %p122 = scmp.eq.s32.totalorder %s121, 0
      %s124 = sadd.s32 %s123, 1
      %s125 = scalar_select %p122, %s123, %s124
      %p128 = pneg %p122
      %p129 = scmp.eq.s32.totalorder %s19, 1
      %p130 = por %p128, %p129
      %p131 = scmp.ne.s32.totalorder %s123, %s126
      %p132 = scmp.eq.s32.totalorder %s19, 0
      %p133 = por %p131, %p132
      %p134 = scmp.ne.s32.totalorder %s123, %s126
      %p135 = scmp.eq.s32.totalorder %s24, 1
      %p136 = por %p134, %p135
      %p137 = scmp.ne.s32.totalorder %s126, %s127
      %p138 = scmp.eq.s32.totalorder %s24, 0
      %p139 = por %p137, %p138
      %p140 = scmp.ne.s32.totalorder %s126, %s127
      %p141 = scmp.eq.s32.totalorder %s25, 1
      %p142 = por %p140, %p141
      %p144 = scmp.ne.s32.totalorder %s127, %s143
      %p145 = scmp.eq.s32.totalorder %s25, 0
      %p146 = por %p144, %p145
      %p147 = scmp.le.s32.totalorder 1, %s19
      %p148 = scmp.lt.s32.totalorder %s19, 3
      %p149 = pnand %p147, %p148
      %p150 = pneg %p149
      // Predicated region
      $region9: #{tpu_custom_call.1} parent=5 // pred_check
        _
      $region10: #{tpu_custom_call.1} parent=5 // pred_check_branch
        %152 = sbr.rel (%p149) target = $region12
      $region11: #{tpu_custom_call.1} parent=5 // pred_region
        %s153 = ssub.s32 %s19, 1
        // Predicated region
        $region13: #{tpu_custom_call.1} parent=11 // pred_check
          %p154 = pneg %p92
        $region14: #{tpu_custom_call.1} parent=11 // pred_check_branch
          %156 = sbr.rel (%p154) target = $region16
        $region15: #{tpu_custom_call.1} parent=11 // pred_region
          %s158 = ssub.s32 2048, 2048
          %159 = vsyncadd [#allocation7], %s158
          %s160 = sshll.u32 [#allocation8], 4
          %s161 = int_to_ptr.vmem [resolvable:$true] %s160
          %166 = dma.hbm_to_vmem [thread:$0]  %s2, 2048, %s161, [#allocation7], 128, 128, 8
        $region16: #{tpu_custom_call.1} parent=11 // pred_fallthru
          _
        // Predicated region
        $region17: #{tpu_custom_call.1} parent=11 // pred_check
          %p167 = pneg %p113
        $region18: #{tpu_custom_call.1} parent=11 // pred_check_branch
          %169 = sbr.rel (%p167) target = $region20
        $region19: #{tpu_custom_call.1} parent=11 // pred_region
          _
        $region20: #{tpu_custom_call.1} parent=11 // pred_fallthru
          _
      $region12: #{tpu_custom_call.1} parent=5 // pred_fallthru
        _
      %p170 = scmp.lt.s32.totalorder %s19, 2
      // Predicated region
      $region21: #{tpu_custom_call.1} parent=5 // pred_check
        %p171 = pneg %p170
      $region22: #{tpu_custom_call.1} parent=5 // pred_check_branch
        %173 = sbr.rel (%p171) target = $region24
      $region23: #{tpu_custom_call.1} parent=5 // pred_region
        // Predicated region
        $region25: #{tpu_custom_call.1} parent=23 // pred_check
          %p174 = pneg %p39
        $region26: #{tpu_custom_call.1} parent=23 // pred_check_branch
          %176 = sbr.rel (%p174) target = $region28
        $region27: #{tpu_custom_call.1} parent=23 // pred_region
          %s177 = sand.u32 %s29, 1
          %s178 = scalar_lea.sflag [#allocation4], %s177
          %s179 = sand.u32 %s29, 1
          %s180 = smul.addr %s179, 128
          %s181 = scalar_lea.vmem [#allocation3], %s180
          %s183 = ssub.s32 2048, 2048
          %184 = vsyncadd %s178, %s183
          %s185 = smul.addr %s19, 16
          %s186 = smul.addr %s185, 128
          %s187 = scalar_lea.hbm %s0, %s186
          %s188 = sshll.u32 %s181, 4
          %s189 = int_to_ptr.vmem [resolvable:$true] %s188
          %194 = dma.hbm_to_vmem [thread:$0]  %s187, 2048, %s189, %s178, 128, 128, 8
        $region28: #{tpu_custom_call.1} parent=23 // pred_fallthru
          _
        // Predicated region
        $region29: #{tpu_custom_call.1} parent=23 // pred_check
          %p195 = pneg %p65
        $region30: #{tpu_custom_call.1} parent=23 // pred_check_branch
          %197 = sbr.rel (%p195) target = $region32
        $region31: #{tpu_custom_call.1} parent=23 // pred_region
          %s198 = sand.u32 %s19, 1
          %s199 = scalar_lea.sflag [#allocation7], %s198
          %s200 = sand.u32 %s55, 1
          %s201 = smul.addr %s200, 128
          %s202 = scalar_lea.vmem [#allocation6], %s201
          %s204 = ssub.s32 2048, 2048
          %205 = vsyncadd %s199, %s204
          %s206 = smul.addr %s19, 16
          %s207 = smul.addr %s206, 128
          %s208 = scalar_lea.hbm %s1, %s207
          %s209 = sshll.u32 %s202, 4
          %s210 = int_to_ptr.vmem [resolvable:$true] %s209
          %215 = dma.hbm_to_vmem [thread:$0]  %s208, 2048, %s210, %s199, 128, 128, 8
        $region32: #{tpu_custom_call.1} parent=23 // pred_fallthru
          _
      $region24: #{tpu_custom_call.1} parent=5 // pred_fallthru
        _
      %p216 = scmp.le.s32.totalorder 1, %s19
      %p217 = scmp.lt.s32.totalorder %s19, 3
      %p218 = pnand %p216, %p217
      %p219 = pneg %p218
      // Predicated region
      $region33: #{tpu_custom_call.1} parent=5 // pred_check
        _
      $region34: #{tpu_custom_call.1} parent=5 // pred_check_branch
        %221 = sbr.rel (%p218) target = $region36
      $region35: #{tpu_custom_call.1} parent=5 // pred_region
        %s222 = ssub.s32 %s19, 1
        %s223 = sand.u32 %s32, 1
        %s224 = scalar_lea.sflag [#allocation4], %s223
        %s225 = sand.u32 %s32, 1
        %s226 = smul.addr %s225, 128
        %s227 = scalar_lea.vmem [#allocation3], %s226
        // Predicated region
        $region37: #{tpu_custom_call.1} parent=35 // pred_check
          %p228 = pneg %p45
        $region38: #{tpu_custom_call.1} parent=35 // pred_check_branch
          %230 = sbr.rel (%p228) target = $region40
        $region39: #{tpu_custom_call.1} parent=35 // pred_region
          %231 = dma.done %s224, 2048
        $region40: #{tpu_custom_call.1} parent=35 // pred_fallthru
          _
        %s232 = sand.u32 %s24, 1
        %s233 = scalar_lea.sflag [#allocation7], %s232
        %s234 = sand.u32 %s58, 1
        %s235 = smul.addr %s234, 128
        %s236 = scalar_lea.vmem [#allocation6], %s235
        // Predicated region
        $region41: #{tpu_custom_call.1} parent=35 // pred_check
          %p237 = pneg %p71
        $region42: #{tpu_custom_call.1} parent=35 // pred_check_branch
          %239 = sbr.rel (%p237) target = $region44
        $region43: #{tpu_custom_call.1} parent=35 // pred_region
          %240 = dma.done %s233, 2048
        $region44: #{tpu_custom_call.1} parent=35 // pred_fallthru
          _
        // Predicated region
        $region45: #{tpu_custom_call.1} parent=35 // pred_check
          %p241 = pneg %p92
        $region46: #{tpu_custom_call.1} parent=35 // pred_check_branch
          %243 = sbr.rel (%p241) target = $region48
        $region47: #{tpu_custom_call.1} parent=35 // pred_region
          %244 = dma.done [#allocation7], 2048
        $region48: #{tpu_custom_call.1} parent=35 // pred_fallthru
          _
        %s245 = sand.u32 %s32, 1
        %s246 = scalar_lea.sflag [#allocation4], %s245
        %s247 = sand.u32 %s32, 1
        %s248 = smul.addr %s247, 128
        %s249 = scalar_lea.vmem [#allocation3], %s248
        %p250 = pneg %p45
        %p251 = pneg %p42
        %s252 = sand.u32 %s24, 1
        %s253 = scalar_lea.sflag [#allocation7], %s252
        %s254 = sand.u32 %s58, 1
        %s255 = smul.addr %s254, 128
        %s256 = scalar_lea.vmem [#allocation6], %s255
        %p257 = pneg %p71
        %p258 = pneg %p68
        %p259 = pneg %p92
        %p260 = pneg %p89
        %p261 = pneg %p113
        %p262 = pneg %p110
        %p263 = pneg %p139
        %p264 = pneg %p136
        %s265 = sand.u32 %s126, 1
        %s266 = scalar_lea.sflag [#allocation5], %s265
        %s267 = sand.u32 %s126, 1
        %s268 = smul.addr %s267, 512
        %s269 = scalar_lea.vmem [#allocation9], %s268
        %v270 = vld [vmem:[%s227] sm:$0xff]
        %v271 = vld [vmem:[%s227 + $0x8] sm:$0xff]
        %v272 = vld [vmem:[%s227 + $0x10] sm:$0xff]
        %v273 = vld [vmem:[%s227 + $0x18] sm:$0xff]
        %v274 = vld [vmem:[%s227 + $0x20] sm:$0xff]
        %v275 = vld [vmem:[%s227 + $0x28] sm:$0xff]
        %v276 = vld [vmem:[%s227 + $0x30] sm:$0xff]
        %v277 = vld [vmem:[%s227 + $0x38] sm:$0xff]
        %v278 = vld [vmem:[%s227 + $0x40] sm:$0xff]
        %v279 = vld [vmem:[%s227 + $0x48] sm:$0xff]
        %v280 = vld [vmem:[%s227 + $0x50] sm:$0xff]
        %v281 = vld [vmem:[%s227 + $0x58] sm:$0xff]
        %v282 = vld [vmem:[%s227 + $0x60] sm:$0xff]
        %v283 = vld [vmem:[%s227 + $0x68] sm:$0xff]
        %v284 = vld [vmem:[%s227 + $0x70] sm:$0xff]
        %v285 = vld [vmem:[%s227 + $0x78] sm:$0xff]
        %v286 = vld [vmem:[#allocation8] sm:$0xff]
        %v287 = vld [vmem:[#allocation8 + $0x8] sm:$0xff]
        %v288 = vld [vmem:[#allocation8 + $0x10] sm:$0xff]
        %v289 = vld [vmem:[#allocation8 + $0x18] sm:$0xff]
        %v290 = vld [vmem:[#allocation8 + $0x20] sm:$0xff]
        %v291 = vld [vmem:[#allocation8 + $0x28] sm:$0xff]
        %v292 = vld [vmem:[#allocation8 + $0x30] sm:$0xff]
        %v293 = vld [vmem:[#allocation8 + $0x38] sm:$0xff]
        %v294 = vld [vmem:[#allocation8 + $0x40] sm:$0xff]
        %v295 = vld [vmem:[#allocation8 + $0x48] sm:$0xff]
        %v296 = vld [vmem:[#allocation8 + $0x50] sm:$0xff]
        %v297 = vld [vmem:[#allocation8 + $0x58] sm:$0xff]
        %v298 = vld [vmem:[#allocation8 + $0x60] sm:$0xff]
        %v299 = vld [vmem:[#allocation8 + $0x68] sm:$0xff]
        %v300 = vld [vmem:[#allocation8 + $0x70] sm:$0xff]
        %v301 = vld [vmem:[#allocation8 + $0x78] sm:$0xff]
        %v302 = vld [vmem:[%s3] sm:$0x1]
        %v304 = vlaneseq
        %v305 = vshrl.u32 %v304, 7
        %v306 = vsub.s32 0, %v305
        %v307 = vrot.slane %v302, %v306
        %309 = vmatprep.subr.mxu0 0.0
        %310 = vmatpush1.msra.mxu0 %v286
        %311 = vmatprep.subr.mxu0 0.0
        %312 = vmatpush1.msra.mxu0 %v287
        %313 = vmatprep.subr.mxu0 0.0
        %314 = vmatpush1.msra.mxu0 %v288
        %315 = vmatprep.subr.mxu0 0.0
        %316 = vmatpush1.msra.mxu0 %v289
        %317 = vmatprep.subr.mxu0 0.0
        %318 = vmatpush1.msra.mxu0 %v290
        %319 = vmatprep.subr.mxu0 0.0
        %320 = vmatpush1.msra.mxu0 %v291
        %321 = vmatprep.subr.mxu0 0.0
        %322 = vmatpush1.msra.mxu0 %v292
        %323 = vmatprep.subr.mxu0 0.0
        %324 = vmatpush1.msra.mxu0 %v293
        %325 = vmatprep.subr.mxu0 0.0
        %326 = vmatpush1.msra.mxu0 %v294
        %327 = vmatprep.subr.mxu0 0.0
        %328 = vmatpush1.msra.mxu0 %v295
        %329 = vmatprep.subr.mxu0 0.0
        %330 = vmatpush1.msra.mxu0 %v296
        %331 = vmatprep.subr.mxu0 0.0
        %332 = vmatpush1.msra.mxu0 %v297
        %333 = vmatprep.subr.mxu0 0.0
        %334 = vmatpush1.msra.mxu0 %v298
        %335 = vmatprep.subr.mxu0 0.0
        %336 = vmatpush1.msra.mxu0 %v299
        %337 = vmatprep.subr.mxu0 0.0
        %338 = vmatpush1.msra.mxu0 %v300
        %339 = vmatprep.subr.mxu0 0.0
        %340 = vmatpush1.msra.mxu0 %v301
        %341 = vmatprep.subr.mxu0 0.0
        %342 = vmatpush1.msra.mxu0 0.0
        %343 = vmatprep.subr.mxu0 0.0
        %344 = vmatpush1.msra.mxu0 0.0
        %345 = vmatprep.subr.mxu0 0.0
        %346 = vmatpush1.msra.mxu0 0.0
        %347 = vmatprep.subr.mxu0 0.0
        %348 = vmatpush1.msra.mxu0 0.0
        %349 = vmatprep.subr.mxu0 0.0
        %350 = vmatpush1.msra.mxu0 0.0
        %351 = vmatprep.subr.mxu0 0.0
        %352 = vmatpush1.msra.mxu0 0.0
        %353 = vmatprep.subr.mxu0 0.0
        %354 = vmatpush1.msra.mxu0 0.0
        %355 = vmatprep.subr.mxu0 0.0
        %356 = vmatpush1.msra.mxu0 0.0
        %357 = vmatprep.subr.mxu0 0.0
        %358 = vmatpush1.msra.mxu0 0.0
        %359 = vmatprep.subr.mxu0 0.0
        %360 = vmatpush1.msra.mxu0 0.0
        %361 = vmatprep.subr.mxu0 0.0
        %362 = vmatpush1.msra.mxu0 0.0
        %363 = vmatprep.subr.mxu0 0.0
        %364 = vmatpush1.msra.mxu0 0.0
        %365 = vmatprep.subr.mxu0 0.0
        %366 = vmatpush1.msra.mxu0 0.0
        %367 = vmatprep.subr.mxu0 0.0
        %368 = vmatpush1.msra.mxu0 0.0
        %369 = vmatprep.subr.mxu0 0.0
        %370 = vmatpush1.msra.mxu0 0.0
        %371 = vmatprep.subr.mxu0 0.0
        %372 = vmatpush1.msra.mxu0 0.0
        %373 = vmatprep.mubr.f32.mxu0 0.0
        %374 = vmatmul.mubr.f32.gmra.mrb[0].mxu0 %v270
        %v375 = vpop.f32.mrb[0].mxu0
        %v376 = vadd.f32 %v307, %v375
        %v377 = vpop.f32.mrb[0].mxu0
        %378 = vmatprep.mubr.f32.mxu0 0.0
        %379 = vmatmul.mubr.f32.gmra.mrb[0].mxu0 %v271
        %v380 = vpop.f32.mrb[0].mxu0
        %v381 = vadd.f32 %v307, %v380
        %v382 = vpop.f32.mrb[0].mxu0
        %383 = vmatprep.mubr.f32.mxu0 0.0
        %384 = vmatmul.mubr.f32.gmra.mrb[0].mxu0 %v272
        %v385 = vpop.f32.mrb[0].mxu0
        %v386 = vadd.f32 %v307, %v385
        %v387 = vpop.f32.mrb[0].mxu0
        %388 = vmatprep.mubr.f32.mxu0 0.0
        %389 = vmatmul.mubr.f32.gmra.mrb[0].mxu0 %v273
        %v390 = vpop.f32.mrb[0].mxu0
        %v391 = vadd.f32 %v307, %v390
        %v392 = vpop.f32.mrb[0].mxu0
        %393 = vmatprep.mubr.f32.mxu0 0.0
        %394 = vmatmul.mubr.f32.gmra.mrb[0].mxu0 %v274
        %v395 = vpop.f32.mrb[0].mxu0
        %v396 = vadd.f32 %v307, %v395
        %v397 = vpop.f32.mrb[0].mxu0
        %398 = vmatprep.mubr.f32.mxu0 0.0
        %399 = vmatmul.mubr.f32.gmra.mrb[0].mxu0 %v275
        %v400 = vpop.f32.mrb[0].mxu0
        %v401 = vadd.f32 %v307, %v400
        %v402 = vpop.f32.mrb[0].mxu0
        %403 = vmatprep.mubr.f32.mxu0 0.0
        %404 = vmatmul.mubr.f32.gmra.mrb[0].mxu0 %v276
        %v405 = vpop.f32.mrb[0].mxu0
        %v406 = vadd.f32 %v307, %v405
        %v407 = vpop.f32.mrb[0].mxu0
        %408 = vmatprep.mubr.f32.mxu0 0.0
        %409 = vmatmul.mubr.f32.gmra.mrb[0].mxu0 %v277
        %v410 = vpop.f32.mrb[0].mxu0
        %v411 = vadd.f32 %v307, %v410
        %v412 = vpop.f32.mrb[0].mxu0
        %413 = vmatprep.mubr.f32.mxu0 0.0
        %414 = vmatmul.mubr.f32.gmra.mrb[0].mxu0 %v278
        %v415 = vpop.f32.mrb[0].mxu0
        %v416 = vadd.f32 %v307, %v415
        %v417 = vpop.f32.mrb[0].mxu0
        %418 = vmatprep.mubr.f32.mxu0 0.0
        %419 = vmatmul.mubr.f32.gmra.mrb[0].mxu0 %v279
        %v420 = vpop.f32.mrb[0].mxu0
        %v421 = vadd.f32 %v307, %v420
        %v422 = vpop.f32.mrb[0].mxu0
        %423 = vmatprep.mubr.f32.mxu0 0.0
        %424 = vmatmul.mubr.f32.gmra.mrb[0].mxu0 %v280
        %v425 = vpop.f32.mrb[0].mxu0
        %v426 = vadd.f32 %v307, %v425
        %v427 = vpop.f32.mrb[0].mxu0
        %428 = vmatprep.mubr.f32.mxu0 0.0
        %429 = vmatmul.mubr.f32.gmra.mrb[0].mxu0 %v281
        %v430 = vpop.f32.mrb[0].mxu0
        %v431 = vadd.f32 %v307, %v430
        %v432 = vpop.f32.mrb[0].mxu0
        %433 = vmatprep.mubr.f32.mxu0 0.0
        %434 = vmatmul.mubr.f32.gmra.mrb[0].mxu0 %v282
        %v435 = vpop.f32.mrb[0].mxu0
        %v436 = vadd.f32 %v307, %v435
        %v437 = vpop.f32.mrb[0].mxu0
        %438 = vmatprep.mubr.f32.mxu0 0.0
        %439 = vmatmul.mubr.f32.gmra.mrb[0].mxu0 %v283
        %v440 = vpop.f32.mrb[0].mxu0
        %v441 = vadd.f32 %v307, %v440
        %v442 = vpop.f32.mrb[0].mxu0
        %443 = vmatprep.mubr.f32.mxu0 0.0
        %444 = vmatmul.mubr.f32.gmra.mrb[0].mxu0 %v284
        %v445 = vpop.f32.mrb[0].mxu0
        %v446 = vadd.f32 %v307, %v445
        %v447 = vpop.f32.mrb[0].mxu0
        %448 = vmatprep.mubr.f32.mxu0 0.0
        %449 = vmatmul.mubr.f32.gmra.mrb[0].mxu0 %v285
        %v450 = vpop.f32.mrb[0].mxu0
        %v451 = vadd.f32 %v307, %v450
        %v452 = vpop.f32.mrb[0].mxu0
        %453 = vdwg.mxu0
        %454 = vst [vmem:[#allocation2] sm:$0xff] %v376
        %455 = vst [vmem:[#allocation2 + $0x8] sm:$0xff] %v381
        %456 = vst [vmem:[#allocation2 + $0x10] sm:$0xff] %v386
        %457 = vst [vmem:[#allocation2 + $0x18] sm:$0xff] %v391
        %458 = vst [vmem:[#allocation2 + $0x20] sm:$0xff] %v396
        %459 = vst [vmem:[#allocation2 + $0x28] sm:$0xff] %v401
        %460 = vst [vmem:[#allocation2 + $0x30] sm:$0xff] %v406
        %461 = vst [vmem:[#allocation2 + $0x38] sm:$0xff] %v411
        %462 = vst [vmem:[#allocation2 + $0x40] sm:$0xff] %v416
        %463 = vst [vmem:[#allocation2 + $0x48] sm:$0xff] %v421
        %464 = vst [vmem:[#allocation2 + $0x50] sm:$0xff] %v426
        %465 = vst [vmem:[#allocation2 + $0x58] sm:$0xff] %v431
        %466 = vst [vmem:[#allocation2 + $0x60] sm:$0xff] %v436
        %467 = vst [vmem:[#allocation2 + $0x68] sm:$0xff] %v441
        %468 = vst [vmem:[#allocation2 + $0x70] sm:$0xff] %v446
        %469 = vst [vmem:[#allocation2 + $0x78] sm:$0xff] %v451
        %v470 = vld [vmem:[#allocation2] sm:$0xff]
        %v471 = vld [vmem:[#allocation2 + $0x8] sm:$0xff]
        %v472 = vld [vmem:[#allocation2 + $0x10] sm:$0xff]
        %v473 = vld [vmem:[#allocation2 + $0x18] sm:$0xff]
        %v474 = vld [vmem:[#allocation2 + $0x20] sm:$0xff]
        %v475 = vld [vmem:[#allocation2 + $0x28] sm:$0xff]
        %v476 = vld [vmem:[#allocation2 + $0x30] sm:$0xff]
        %v477 = vld [vmem:[#allocation2 + $0x38] sm:$0xff]
        %v478 = vld [vmem:[#allocation2 + $0x40] sm:$0xff]
        %v479 = vld [vmem:[#allocation2 + $0x48] sm:$0xff]
        %v480 = vld [vmem:[#allocation2 + $0x50] sm:$0xff]
        %v481 = vld [vmem:[#allocation2 + $0x58] sm:$0xff]
        %v482 = vld [vmem:[#allocation2 + $0x60] sm:$0xff]
        %v483 = vld [vmem:[#allocation2 + $0x68] sm:$0xff]
        %v484 = vld [vmem:[#allocation2 + $0x70] sm:$0xff]
        %v485 = vld [vmem:[#allocation2 + $0x78] sm:$0xff]
        %v486 = vld [vmem:[%s236] sm:$0xff]
        %v487 = vld [vmem:[%s236 + $0x8] sm:$0xff]
        %v488 = vld [vmem:[%s236 + $0x10] sm:$0xff]
        %v489 = vld [vmem:[%s236 + $0x18] sm:$0xff]
        %v490 = vld [vmem:[%s236 + $0x20] sm:$0xff]
        %v491 = vld [vmem:[%s236 + $0x28] sm:$0xff]
        %v492 = vld [vmem:[%s236 + $0x30] sm:$0xff]
        %v493 = vld [vmem:[%s236 + $0x38] sm:$0xff]
        %v494 = vld [vmem:[%s236 + $0x40] sm:$0xff]
        %v495 = vld [vmem:[%s236 + $0x48] sm:$0xff]
        %v496 = vld [vmem:[%s236 + $0x50] sm:$0xff]
        %v497 = vld [vmem:[%s236 + $0x58] sm:$0xff]
        %v498 = vld [vmem:[%s236 + $0x60] sm:$0xff]
        %v499 = vld [vmem:[%s236 + $0x68] sm:$0xff]
        %v500 = vld [vmem:[%s236 + $0x70] sm:$0xff]
        %v501 = vld [vmem:[%s236 + $0x78] sm:$0xff]
        %vm502 = vcmask 261120
        %v504 = vsel %vm502, %v470, 0
        %v507 = vsel %vm502, %v471, 0
        %v510 = vsel %vm502, %v472, 0
        %v513 = vsel %vm502, %v473, 0
        %v516 = vsel %vm502, %v474, 0
        %v519 = vsel %vm502, %v475, 0
        %v522 = vsel %vm502, %v476, 0
        %v525 = vsel %vm502, %v477, 0
        %v528 = vsel %vm502, %v478, 0
        %v531 = vsel %vm502, %v479, 0
        %v534 = vsel %vm502, %v480, 0
        %v537 = vsel %vm502, %v481, 0
        %v540 = vsel %vm502, %v482, 0
        %v543 = vsel %vm502, %v483, 0
        %v546 = vsel %vm502, %v484, 0
        %v549 = vsel %vm502, %v485, 0
        %551 = vmatprep.subr.mxu0 0.0
        %552 = vmatpush1.xpose.msra.mxu0 %v504
        %553 = vmatprep.subr.mxu0 0.0
        %554 = vmatpush1.xpose.msra.mxu0 %v507
        %555 = vmatprep.subr.mxu0 0.0
        %556 = vmatpush1.xpose.msra.mxu0 %v510
        %557 = vmatprep.subr.mxu0 0.0
        %558 = vmatpush1.xpose.msra.mxu0 %v513
        %559 = vmatprep.subr.mxu0 0.0
        %560 = vmatpush1.xpose.msra.mxu0 %v516
        %561 = vmatprep.subr.mxu0 0.0
        %562 = vmatpush1.xpose.msra.mxu0 %v519
        %563 = vmatprep.subr.mxu0 0.0
        %564 = vmatpush1.xpose.msra.mxu0 %v522
        %565 = vmatprep.subr.mxu0 0.0
        %566 = vmatpush1.xpose.msra.mxu0 %v525
        %567 = vmatprep.subr.mxu0 0.0
        %568 = vmatpush1.xpose.msra.mxu0 %v528
        %569 = vmatprep.subr.mxu0 0.0
        %570 = vmatpush1.xpose.msra.mxu0 %v531
        %571 = vmatprep.subr.mxu0 0.0
        %572 = vmatpush1.xpose.msra.mxu0 %v534
        %573 = vmatprep.subr.mxu0 0.0
        %574 = vmatpush1.xpose.msra.mxu0 %v537
        %575 = vmatprep.subr.mxu0 0.0
        %576 = vmatpush1.xpose.msra.mxu0 %v540
        %577 = vmatprep.subr.mxu0 0.0
        %578 = vmatpush1.xpose.msra.mxu0 %v543
        %579 = vmatprep.subr.mxu0 0.0
        %580 = vmatpush1.xpose.msra.mxu0 %v546
        %581 = vmatprep.subr.mxu0 0.0
        %582 = vmatpush1.xpose.msra.mxu0 %v549
        %583 = vmatprep.subr.mxu0 0.0
        %584 = vmatpush1.xpose.msra.mxu0 0.0
        %585 = vmatprep.subr.mxu0 0.0
        %586 = vmatpush1.xpose.msra.mxu0 0.0
        %587 = vmatprep.subr.mxu0 0.0
        %588 = vmatpush1.xpose.msra.mxu0 0.0
        %589 = vmatprep.subr.mxu0 0.0
        %590 = vmatpush1.xpose.msra.mxu0 0.0
        %591 = vmatprep.subr.mxu0 0.0
        %592 = vmatpush1.xpose.msra.mxu0 0.0
        %593 = vmatprep.subr.mxu0 0.0
        %594 = vmatpush1.xpose.msra.mxu0 0.0
        %595 = vmatprep.subr.mxu0 0.0
        %596 = vmatpush1.xpose.msra.mxu0 0.0
        %597 = vmatprep.subr.mxu0 0.0
        %598 = vmatpush1.xpose.msra.mxu0 0.0
        %599 = vmatprep.subr.mxu0 0.0
        %600 = vmatpush1.xpose.msra.mxu0 0.0
        %601 = vmatprep.subr.mxu0 0.0
        %602 = vmatpush1.xpose.msra.mxu0 0.0
        %603 = vmatprep.subr.mxu0 0.0
        %604 = vmatpush1.xpose.msra.mxu0 0.0
        %605 = vmatprep.subr.mxu0 0.0
        %606 = vmatpush1.xpose.msra.mxu0 0.0
        %607 = vmatprep.subr.mxu0 0.0
        %608 = vmatpush1.xpose.msra.mxu0 0.0
        %609 = vmatprep.subr.mxu0 0.0
        %610 = vmatpush1.xpose.msra.mxu0 0.0
        %611 = vmatprep.subr.mxu0 0.0
        %612 = vmatpush1.xpose.msra.mxu0 0.0
        %613 = vmatprep.subr.mxu0 0.0
        %614 = vmatpush1.xpose.msra.mxu0 0.0
        %615 = vmatprep.mubr.f32.mxu0 0.0
        %616 = vmatmul.mubr.f32.gmra.mrb[0].mxu0 %v504
        %v617 = vpop.f32.mrb[0].mxu0
        %v618 = vadd.f32 %v486, %v617
        %v619 = vpop.f32.mrb[0].mxu0
        %620 = vmatprep.mubr.f32.mxu0 0.0
        %621 = vmatmul.mubr.f32.gmra.mrb[0].mxu0 %v507
        %v622 = vpop.f32.mrb[0].mxu0
        %v623 = vadd.f32 %v487, %v622
        %v624 = vpop.f32.mrb[0].mxu0
        %625 = vmatprep.mubr.f32.mxu0 0.0
        %626 = vmatmul.mubr.f32.gmra.mrb[0].mxu0 %v510
        %v627 = vpop.f32.mrb[0].mxu0
        %v628 = vadd.f32 %v488, %v627
        %v629 = vpop.f32.mrb[0].mxu0
        %630 = vmatprep.mubr.f32.mxu0 0.0
        %631 = vmatmul.mubr.f32.gmra.mrb[0].mxu0 %v513
        %v632 = vpop.f32.mrb[0].mxu0
        %v633 = vadd.f32 %v489, %v632
        %v634 = vpop.f32.mrb[0].mxu0
        %635 = vmatprep.mubr.f32.mxu0 0.0
        %636 = vmatmul.mubr.f32.gmra.mrb[0].mxu0 %v516
        %v637 = vpop.f32.mrb[0].mxu0
        %v638 = vadd.f32 %v490, %v637
        %v639 = vpop.f32.mrb[0].mxu0
        %640 = vmatprep.mubr.f32.mxu0 0.0
        %641 = vmatmul.mubr.f32.gmra.mrb[0].mxu0 %v519
        %v642 = vpop.f32.mrb[0].mxu0
        %v643 = vadd.f32 %v491, %v642
        %v644 = vpop.f32.mrb[0].mxu0
        %645 = vmatprep.mubr.f32.mxu0 0.0
        %646 = vmatmul.mubr.f32.gmra.mrb[0].mxu0 %v522
        %v647 = vpop.f32.mrb[0].mxu0
        %v648 = vadd.f32 %v492, %v647
        %v649 = vpop.f32.mrb[0].mxu0
        %650 = vmatprep.mubr.f32.mxu0 0.0
        %651 = vmatmul.mubr.f32.gmra.mrb[0].mxu0 %v525
        %v652 = vpop.f32.mrb[0].mxu0
        %v653 = vadd.f32 %v493, %v652
        %v654 = vpop.f32.mrb[0].mxu0
        %655 = vmatprep.mubr.f32.mxu0 0.0
        %656 = vmatmul.mubr.f32.gmra.mrb[0].mxu0 %v528
        %v657 = vpop.f32.mrb[0].mxu0
        %v658 = vadd.f32 %v494, %v657
        %v659 = vpop.f32.mrb[0].mxu0
        %660 = vmatprep.mubr.f32.mxu0 0.0
        %661 = vmatmul.mubr.f32.gmra.mrb[0].mxu0 %v531
        %v662 = vpop.f32.mrb[0].mxu0
        %v663 = vadd.f32 %v495, %v662
        %v664 = vpop.f32.mrb[0].mxu0
        %665 = vmatprep.mubr.f32.mxu0 0.0
        %666 = vmatmul.mubr.f32.gmra.mrb[0].mxu0 %v534
        %v667 = vpop.f32.mrb[0].mxu0
        %v668 = vadd.f32 %v496, %v667
        %v669 = vpop.f32.mrb[0].mxu0
        %670 = vmatprep.mubr.f32.mxu0 0.0
        %671 = vmatmul.mubr.f32.gmra.mrb[0].mxu0 %v537
        %v672 = vpop.f32.mrb[0].mxu0
        %v673 = vadd.f32 %v497, %v672
        %v674 = vpop.f32.mrb[0].mxu0
        %675 = vmatprep.mubr.f32.mxu0 0.0
        %676 = vmatmul.mubr.f32.gmra.mrb[0].mxu0 %v540
        %v677 = vpop.f32.mrb[0].mxu0
        %v678 = vadd.f32 %v498, %v677
        %v679 = vpop.f32.mrb[0].mxu0
        %680 = vmatprep.mubr.f32.mxu0 0.0
        %681 = vmatmul.mubr.f32.gmra.mrb[0].mxu0 %v543
        %v682 = vpop.f32.mrb[0].mxu0
        %v683 = vadd.f32 %v499, %v682
        %v684 = vpop.f32.mrb[0].mxu0
        %685 = vmatprep.mubr.f32.mxu0 0.0
        %686 = vmatmul.mubr.f32.gmra.mrb[0].mxu0 %v546
        %v687 = vpop.f32.mrb[0].mxu0
        %v688 = vadd.f32 %v500, %v687
        %v689 = vpop.f32.mrb[0].mxu0
        %690 = vmatprep.mubr.f32.mxu0 0.0
        %691 = vmatmul.mubr.f32.gmra.mrb[0].mxu0 %v549
        %v692 = vpop.f32.mrb[0].mxu0
        %v693 = vadd.f32 %v501, %v692
        %v694 = vpop.f32.mrb[0].mxu0
        %695 = vdwg.mxu0
        %v696 = vmax.f32 %v618, %v638
        %v697 = vmax.f32 %v623, %v643
        %v698 = vmax.f32 %v628, %v648
        %v699 = vmax.f32 %v633, %v653
        %v700 = vmax.f32 %v696, %v658
        %v701 = vmax.f32 %v697, %v663
        %v702 = vmax.f32 %v698, %v668
        %v703 = vmax.f32 %v699, %v673
        %v704 = vmax.f32 %v700, %v678
        %v705 = vmax.f32 %v701, %v683
        %v706 = vmax.f32 %v702, %v688
        %v707 = vmax.f32 %v703, %v693
        %v708 = vmax.f32 %v704, %v705
        %v709 = vmax.f32 %v706, %v707
        %v710 = vmax.f32 %v708, %v709
        %711 = vmax.xlane.f32.xlu0 %v710
        %v712 = vpop.xlane.xlu0 %711
        %v713 = vrot.slane %v712, 4
        %v714 = vmax.f32 %v712, %v713
        %v715 = vrot.slane %v714, 2
        %v716 = vmax.f32 %v714, %v715
        %v717 = vrot.slane %v716, 1
        %v718 = vmax.f32 %v716, %v717
        %s719 = vtos %v718
        %v720 = vstv %s719
        %v721 = vsub.f32 %v618, %v720
        %v722 = vsub.f32 %v623, %v720
        %v723 = vsub.f32 %v628, %v720
        %v724 = vsub.f32 %v633, %v720
        %v725 = vsub.f32 %v638, %v720
        %v726 = vsub.f32 %v643, %v720
        %v727 = vsub.f32 %v648, %v720
        %v728 = vsub.f32 %v653, %v720
        %v729 = vsub.f32 %v658, %v720
        %v730 = vsub.f32 %v663, %v720
        %v731 = vsub.f32 %v668, %v720
        %v732 = vsub.f32 %v673, %v720
        %v733 = vsub.f32 %v678, %v720
        %v734 = vsub.f32 %v683, %v720
        %v735 = vsub.f32 %v688, %v720
        %v736 = vsub.f32 %v693, %v720
        %v737 = vmul.f32 %v721, 1.442695
        %v738 = vpow.pop %v737
        %v739 = vmul.f32 %v722, 1.442695
        %v740 = vpow.pop %v739
        %v741 = vmul.f32 %v723, 1.442695
        %v742 = vpow.pop %v741
        %v743 = vmul.f32 %v724, 1.442695
        %v744 = vpow.pop %v743
        %v745 = vmul.f32 %v725, 1.442695
        %v746 = vpow.pop %v745
        %v747 = vmul.f32 %v726, 1.442695
        %v748 = vpow.pop %v747
        %v749 = vmul.f32 %v727, 1.442695
        %v750 = vpow.pop %v749
        %v751 = vmul.f32 %v728, 1.442695
        %v752 = vpow.pop %v751
        %v753 = vmul.f32 %v729, 1.442695
        %v754 = vpow.pop %v753
        %v755 = vmul.f32 %v730, 1.442695
        %v756 = vpow.pop %v755
        %v757 = vmul.f32 %v731, 1.442695
        %v758 = vpow.pop %v757
        %v759 = vmul.f32 %v732, 1.442695
        %v760 = vpow.pop %v759
        %v761 = vmul.f32 %v733, 1.442695
        %v762 = vpow.pop %v761
        %v763 = vmul.f32 %v734, 1.442695
        %v764 = vpow.pop %v763
        %v765 = vmul.f32 %v735, 1.442695
        %v766 = vpow.pop %v765
        %v767 = vmul.f32 %v736, 1.442695
        %v768 = vpow.pop %v767
        %v769 = vadd.f32 %v738, %v740
        %v770 = vadd.f32 %v769, %v742
        %v771 = vadd.f32 %v770, %v744
        %v772 = vadd.f32 %v771, %v746
        %v773 = vadd.f32 %v772, %v748
        %v774 = vadd.f32 %v773, %v750
        %v775 = vadd.f32 %v774, %v752
        %v776 = vadd.f32 %v775, %v754
        %v777 = vadd.f32 %v776, %v756
        %v778 = vadd.f32 %v777, %v758
        %v779 = vadd.f32 %v778, %v760
        %v780 = vadd.f32 %v779, %v762
        %v781 = vadd.f32 %v780, %v764
        %v782 = vadd.f32 %v781, %v766
        %v783 = vadd.f32 %v782, %v768
        %784 = vadd.xlane.f32.xlu0 %v783
        %v785 = vpop.xlane.xlu0 %784
        %v786 = vrot.slane %v785, 4
        %v787 = vadd.f32 %v785, %v786
        %v788 = vrot.slane %v787, 2
        %v789 = vadd.f32 %v787, %v788
        %v790 = vrot.slane %v789, 1
        %v791 = vadd.f32 %v789, %v790
        %s792 = vtos %v791
        %v793 = vstv %s792
        %v794 = vrcp.pop %v793
        %795 = vxpose.xlu0.b32.start [1/16] %v738, 128
        %796 = vxpose.xlu0.b32.cont [2/16] %v740, 128
        %797 = vxpose.xlu0.b32.cont [3/16] %v742, 128
        %798 = vxpose.xlu0.b32.cont [4/16] %v744, 128
        %799 = vxpose.xlu0.b32.cont [5/16] %v746, 128
        %800 = vxpose.xlu0.b32.cont [6/16] %v748, 128
        %801 = vxpose.xlu0.b32.cont [7/16] %v750, 128
        %802 = vxpose.xlu0.b32.cont [8/16] %v752, 128
        %803 = vxpose.xlu0.b32.cont [9/16] %v754, 128
        %804 = vxpose.xlu0.b32.cont [10/16] %v756, 128
        %805 = vxpose.xlu0.b32.cont [11/16] %v758, 128
        %806 = vxpose.xlu0.b32.cont [12/16] %v760, 128
        %807 = vxpose.xlu0.b32.cont [13/16] %v762, 128
        %808 = vxpose.xlu0.b32.cont [14/16] %v764, 128
        %809 = vxpose.xlu0.b32.cont [15/16] %v766, 128
        %810 = vxpose.xlu0.b32.end [16/16] %v768, 128
        %v811 = vpop.trf.xlu0
        %v812 = vpop.trf.xlu0
        %v813 = vpop.trf.xlu0
        %v814 = vpop.trf.xlu0
        %v815 = vpop.trf.xlu0
        %v816 = vpop.trf.xlu0
        %v817 = vpop.trf.xlu0
        %v818 = vpop.trf.xlu0
        %v819 = vpop.trf.xlu0
        %v820 = vpop.trf.xlu0
        %v821 = vpop.trf.xlu0
        %v822 = vpop.trf.xlu0
        %v823 = vpop.trf.xlu0
        %v824 = vpop.trf.xlu0
        %v825 = vpop.trf.xlu0
        %v826 = vpop.trf.xlu0
        %v827 = vadd.f32 %v738, %v811
        %v828 = vadd.f32 %v740, %v812
        %v829 = vadd.f32 %v742, %v813
        %v830 = vadd.f32 %v744, %v814
        %v831 = vadd.f32 %v746, %v815
        %v832 = vadd.f32 %v748, %v816
        %v833 = vadd.f32 %v750, %v817
        %v834 = vadd.f32 %v752, %v818
        %v835 = vadd.f32 %v754, %v819
        %v836 = vadd.f32 %v756, %v820
        %v837 = vadd.f32 %v758, %v821
        %v838 = vadd.f32 %v760, %v822
        %v839 = vadd.f32 %v762, %v823
        %v840 = vadd.f32 %v764, %v824
        %v841 = vadd.f32 %v766, %v825
        %v842 = vadd.f32 %v768, %v826
        %v843 = vmul.f32 %v827, %v794
        %v844 = vmul.f32 %v828, %v794
        %v845 = vmul.f32 %v829, %v794
        %v846 = vmul.f32 %v830, %v794
        %v847 = vmul.f32 %v831, %v794
        %v848 = vmul.f32 %v832, %v794
        %v849 = vmul.f32 %v833, %v794
        %v850 = vmul.f32 %v834, %v794
        %v851 = vmul.f32 %v835, %v794
        %v852 = vmul.f32 %v836, %v794
        %v853 = vmul.f32 %v837, %v794
        %v854 = vmul.f32 %v838, %v794
        %v855 = vmul.f32 %v839, %v794
        %v856 = vmul.f32 %v840, %v794
        %v857 = vmul.f32 %v841, %v794
        %v858 = vmul.f32 %v842, %v794
        %859 = vst [vmem:[%s269] sm:$0xff] %v843
        %860 = vst [vmem:[%s269 + $0x8] sm:$0xff] %v844
        %861 = vst [vmem:[%s269 + $0x10] sm:$0xff] %v845
        %862 = vst [vmem:[%s269 + $0x18] sm:$0xff] %v846
        %863 = vst [vmem:[%s269 + $0x20] sm:$0xff] %v847
        %864 = vst [vmem:[%s269 + $0x28] sm:$0xff] %v848
        %865 = vst [vmem:[%s269 + $0x30] sm:$0xff] %v849
        %866 = vst [vmem:[%s269 + $0x38] sm:$0xff] %v850
        %867 = vst [vmem:[%s269 + $0x40] sm:$0xff] %v851
        %868 = vst [vmem:[%s269 + $0x48] sm:$0xff] %v852
        %869 = vst [vmem:[%s269 + $0x50] sm:$0xff] %v853
        %870 = vst [vmem:[%s269 + $0x58] sm:$0xff] %v854
        %871 = vst [vmem:[%s269 + $0x60] sm:$0xff] %v855
        %872 = vst [vmem:[%s269 + $0x68] sm:$0xff] %v856
        %873 = vst [vmem:[%s269 + $0x70] sm:$0xff] %v857
        %874 = vst [vmem:[%s269 + $0x78] sm:$0xff] %v858
        %v875 = vld [vmem:[#allocation2] sm:$0xff]
        %v876 = vld [vmem:[#allocation2 + $0x8] sm:$0xff]
        %v877 = vld [vmem:[#allocation2 + $0x10] sm:$0xff]
        %v878 = vld [vmem:[#allocation2 + $0x18] sm:$0xff]
        %v879 = vld [vmem:[#allocation2 + $0x20] sm:$0xff]
        %v880 = vld [vmem:[#allocation2 + $0x28] sm:$0xff]
        %v881 = vld [vmem:[#allocation2 + $0x30] sm:$0xff]
        %v882 = vld [vmem:[#allocation2 + $0x38] sm:$0xff]
        %v883 = vld [vmem:[#allocation2 + $0x40] sm:$0xff]
        %v884 = vld [vmem:[#allocation2 + $0x48] sm:$0xff]
        %v885 = vld [vmem:[#allocation2 + $0x50] sm:$0xff]
        %v886 = vld [vmem:[#allocation2 + $0x58] sm:$0xff]
        %v887 = vld [vmem:[#allocation2 + $0x60] sm:$0xff]
        %v888 = vld [vmem:[#allocation2 + $0x68] sm:$0xff]
        %v889 = vld [vmem:[#allocation2 + $0x70] sm:$0xff]
        %v890 = vld [vmem:[#allocation2 + $0x78] sm:$0xff]
        %v891 = vld [vmem:[%s236] sm:$0xff]
        %v892 = vld [vmem:[%s236 + $0x8] sm:$0xff]
        %v893 = vld [vmem:[%s236 + $0x10] sm:$0xff]
        %v894 = vld [vmem:[%s236 + $0x18] sm:$0xff]
        %v895 = vld [vmem:[%s236 + $0x20] sm:$0xff]
        %v896 = vld [vmem:[%s236 + $0x28] sm:$0xff]
        %v897 = vld [vmem:[%s236 + $0x30] sm:$0xff]
        %v898 = vld [vmem:[%s236 + $0x38] sm:$0xff]
        %v899 = vld [vmem:[%s236 + $0x40] sm:$0xff]
        %v900 = vld [vmem:[%s236 + $0x48] sm:$0xff]
        %v901 = vld [vmem:[%s236 + $0x50] sm:$0xff]
        %v902 = vld [vmem:[%s236 + $0x58] sm:$0xff]
        %v903 = vld [vmem:[%s236 + $0x60] sm:$0xff]
        %v904 = vld [vmem:[%s236 + $0x68] sm:$0xff]
        %v905 = vld [vmem:[%s236 + $0x70] sm:$0xff]
        %v906 = vld [vmem:[%s236 + $0x78] sm:$0xff]
        %923 = vrot.lane.b32.xlu0 %v875, 96
        %v924 = vpop.permute.xlu0 %923
        %925 = vrot.lane.b32.xlu0 %v876, 96
        %v926 = vpop.permute.xlu0 %925
        %927 = vrot.lane.b32.xlu0 %v877, 96
        %v928 = vpop.permute.xlu0 %927
        %929 = vrot.lane.b32.xlu0 %v878, 96
        %v930 = vpop.permute.xlu0 %929
        %931 = vrot.lane.b32.xlu0 %v879, 96
        %v932 = vpop.permute.xlu0 %931
        %933 = vrot.lane.b32.xlu0 %v880, 96
        %v934 = vpop.permute.xlu0 %933
        %935 = vrot.lane.b32.xlu0 %v881, 96
        %v936 = vpop.permute.xlu0 %935
        %937 = vrot.lane.b32.xlu0 %v882, 96
        %v938 = vpop.permute.xlu0 %937
        %939 = vrot.lane.b32.xlu0 %v883, 96
        %v940 = vpop.permute.xlu0 %939
        %941 = vrot.lane.b32.xlu0 %v884, 96
        %v942 = vpop.permute.xlu0 %941
        %943 = vrot.lane.b32.xlu0 %v885, 96
        %v944 = vpop.permute.xlu0 %943
        %945 = vrot.lane.b32.xlu0 %v886, 96
        %v946 = vpop.permute.xlu0 %945
        %947 = vrot.lane.b32.xlu0 %v887, 96
        %v948 = vpop.permute.xlu0 %947
        %949 = vrot.lane.b32.xlu0 %v888, 96
        %v950 = vpop.permute.xlu0 %949
        %951 = vrot.lane.b32.xlu0 %v889, 96
        %v952 = vpop.permute.xlu0 %951
        %953 = vrot.lane.b32.xlu0 %v890, 96
        %v954 = vpop.permute.xlu0 %953
        %v955 = vsel %vm502, %v924, 0
        %v957 = vsel %vm502, %v926, 0
        %v959 = vsel %vm502, %v928, 0
        %v961 = vsel %vm502, %v930, 0
        %v963 = vsel %vm502, %v932, 0
        %v965 = vsel %vm502, %v934, 0
        %v967 = vsel %vm502, %v936, 0
        %v969 = vsel %vm502, %v938, 0
        %v971 = vsel %vm502, %v940, 0
        %v973 = vsel %vm502, %v942, 0
        %v975 = vsel %vm502, %v944, 0
        %v977 = vsel %vm502, %v946, 0
        %v979 = vsel %vm502, %v948, 0
        %v981 = vsel %vm502, %v950, 0
        %v983 = vsel %vm502, %v952, 0
        %v985 = vsel %vm502, %v954, 0
        %987 = vmatprep.subr.mxu0 0.0
        %988 = vmatpush1.xpose.msra.mxu0 %v955
        %989 = vmatprep.subr.mxu0 0.0
        %990 = vmatpush1.xpose.msra.mxu0 %v957
        %991 = vmatprep.subr.mxu0 0.0
        %992 = vmatpush1.xpose.msra.mxu0 %v959
        %993 = vmatprep.subr.mxu0 0.0
        %994 = vmatpush1.xpose.msra.mxu0 %v961
        %995 = vmatprep.subr.mxu0 0.0
        %996 = vmatpush1.xpose.msra.mxu0 %v963
        %997 = vmatprep.subr.mxu0 0.0
        %998 = vmatpush1.xpose.msra.mxu0 %v965
        %999 = vmatprep.subr.mxu0 0.0
        %1000 = vmatpush1.xpose.msra.mxu0 %v967
        %1001 = vmatprep.subr.mxu0 0.0
        %1002 = vmatpush1.xpose.msra.mxu0 %v969
        %1003 = vmatprep.subr.mxu0 0.0
        %1004 = vmatpush1.xpose.msra.mxu0 %v971
        %1005 = vmatprep.subr.mxu0 0.0
        %1006 = vmatpush1.xpose.msra.mxu0 %v973
        %1007 = vmatprep.subr.mxu0 0.0
        %1008 = vmatpush1.xpose.msra.mxu0 %v975
        %1009 = vmatprep.subr.mxu0 0.0
        %1010 = vmatpush1.xpose.msra.mxu0 %v977
        %1011 = vmatprep.subr.mxu0 0.0
        %1012 = vmatpush1.xpose.msra.mxu0 %v979
        %1013 = vmatprep.subr.mxu0 0.0
        %1014 = vmatpush1.xpose.msra.mxu0 %v981
        %1015 = vmatprep.subr.mxu0 0.0
        %1016 = vmatpush1.xpose.msra.mxu0 %v983
        %1017 = vmatprep.subr.mxu0 0.0
        %1018 = vmatpush1.xpose.msra.mxu0 %v985
        %1019 = vmatprep.subr.mxu0 0.0
        %1020 = vmatpush1.xpose.msra.mxu0 0.0
        %1021 = vmatprep.subr.mxu0 0.0
        %1022 = vmatpush1.xpose.msra.mxu0 0.0
        %1023 = vmatprep.subr.mxu0 0.0
        %1024 = vmatpush1.xpose.msra.mxu0 0.0
        %1025 = vmatprep.subr.mxu0 0.0
        %1026 = vmatpush1.xpose.msra.mxu0 0.0
        %1027 = vmatprep.subr.mxu0 0.0
        %1028 = vmatpush1.xpose.msra.mxu0 0.0
        %1029 = vmatprep.subr.mxu0 0.0
        %1030 = vmatpush1.xpose.msra.mxu0 0.0
        %1031 = vmatprep.subr.mxu0 0.0
        %1032 = vmatpush1.xpose.msra.mxu0 0.0
        %1033 = vmatprep.subr.mxu0 0.0
        %1034 = vmatpush1.xpose.msra.mxu0 0.0
        %1035 = vmatprep.subr.mxu0 0.0
        %1036 = vmatpush1.xpose.msra.mxu0 0.0
        %1037 = vmatprep.subr.mxu0 0.0
        %1038 = vmatpush1.xpose.msra.mxu0 0.0
        %1039 = vmatprep.subr.mxu0 0.0
        %1040 = vmatpush1.xpose.msra.mxu0 0.0
        %1041 = vmatprep.subr.mxu0 0.0
        %1042 = vmatpush1.xpose.msra.mxu0 0.0
        %1043 = vmatprep.subr.mxu0 0.0
        %1044 = vmatpush1.xpose.msra.mxu0 0.0
        %1045 = vmatprep.subr.mxu0 0.0
        %1046 = vmatpush1.xpose.msra.mxu0 0.0
        %1047 = vmatprep.subr.mxu0 0.0
        %1048 = vmatpush1.xpose.msra.mxu0 0.0
        %1049 = vmatprep.subr.mxu0 0.0
        %1050 = vmatpush1.xpose.msra.mxu0 0.0
        %1051 = vmatprep.mubr.f32.mxu0 0.0
        %1052 = vmatmul.mubr.f32.gmra.mrb[0].mxu0 %v955
        %v1053 = vpop.f32.mrb[0].mxu0
        %v1054 = vadd.f32 %v891, %v1053
        %v1055 = vpop.f32.mrb[0].mxu0
        %1056 = vmatprep.mubr.f32.mxu0 0.0
        %1057 = vmatmul.mubr.f32.gmra.mrb[0].mxu0 %v957
        %v1058 = vpop.f32.mrb[0].mxu0
        %v1059 = vadd.f32 %v892, %v1058
        %v1060 = vpop.f32.mrb[0].mxu0
        %1061 = vmatprep.mubr.f32.mxu0 0.0
        %1062 = vmatmul.mubr.f32.gmra.mrb[0].mxu0 %v959
        %v1063 = vpop.f32.mrb[0].mxu0
        %v1064 = vadd.f32 %v893, %v1063
        %v1065 = vpop.f32.mrb[0].mxu0
        %1066 = vmatprep.mubr.f32.mxu0 0.0
        %1067 = vmatmul.mubr.f32.gmra.mrb[0].mxu0 %v961
        %v1068 = vpop.f32.mrb[0].mxu0
        %v1069 = vadd.f32 %v894, %v1068
        %v1070 = vpop.f32.mrb[0].mxu0
        %1071 = vmatprep.mubr.f32.mxu0 0.0
        %1072 = vmatmul.mubr.f32.gmra.mrb[0].mxu0 %v963
        %v1073 = vpop.f32.mrb[0].mxu0
        %v1074 = vadd.f32 %v895, %v1073
        %v1075 = vpop.f32.mrb[0].mxu0
        %1076 = vmatprep.mubr.f32.mxu0 0.0
        %1077 = vmatmul.mubr.f32.gmra.mrb[0].mxu0 %v965
        %v1078 = vpop.f32.mrb[0].mxu0
        %v1079 = vadd.f32 %v896, %v1078
        %v1080 = vpop.f32.mrb[0].mxu0
        %1081 = vmatprep.mubr.f32.mxu0 0.0
        %1082 = vmatmul.mubr.f32.gmra.mrb[0].mxu0 %v967
        %v1083 = vpop.f32.mrb[0].mxu0
        %v1084 = vadd.f32 %v897, %v1083
        %v1085 = vpop.f32.mrb[0].mxu0
        %1086 = vmatprep.mubr.f32.mxu0 0.0
        %1087 = vmatmul.mubr.f32.gmra.mrb[0].mxu0 %v969
        %v1088 = vpop.f32.mrb[0].mxu0
        %v1089 = vadd.f32 %v898, %v1088
        %v1090 = vpop.f32.mrb[0].mxu0
        %1091 = vmatprep.mubr.f32.mxu0 0.0
        %1092 = vmatmul.mubr.f32.gmra.mrb[0].mxu0 %v971
        %v1093 = vpop.f32.mrb[0].mxu0
        %v1094 = vadd.f32 %v899, %v1093
        %v1095 = vpop.f32.mrb[0].mxu0
        %1096 = vmatprep.mubr.f32.mxu0 0.0
        %1097 = vmatmul.mubr.f32.gmra.mrb[0].mxu0 %v973
        %v1098 = vpop.f32.mrb[0].mxu0
        %v1099 = vadd.f32 %v900, %v1098
        %v1100 = vpop.f32.mrb[0].mxu0
        %1101 = vmatprep.mubr.f32.mxu0 0.0
        %1102 = vmatmul.mubr.f32.gmra.mrb[0].mxu0 %v975
        %v1103 = vpop.f32.mrb[0].mxu0
        %v1104 = vadd.f32 %v901, %v1103
        %v1105 = vpop.f32.mrb[0].mxu0
        %1106 = vmatprep.mubr.f32.mxu0 0.0
        %1107 = vmatmul.mubr.f32.gmra.mrb[0].mxu0 %v977
        %v1108 = vpop.f32.mrb[0].mxu0
        %v1109 = vadd.f32 %v902, %v1108
        %v1110 = vpop.f32.mrb[0].mxu0
        %1111 = vmatprep.mubr.f32.mxu0 0.0
        %1112 = vmatmul.mubr.f32.gmra.mrb[0].mxu0 %v979
        %v1113 = vpop.f32.mrb[0].mxu0
        %v1114 = vadd.f32 %v903, %v1113
        %v1115 = vpop.f32.mrb[0].mxu0
        %1116 = vmatprep.mubr.f32.mxu0 0.0
        %1117 = vmatmul.mubr.f32.gmra.mrb[0].mxu0 %v981
        %v1118 = vpop.f32.mrb[0].mxu0
        %v1119 = vadd.f32 %v904, %v1118
        %v1120 = vpop.f32.mrb[0].mxu0
        %1121 = vmatprep.mubr.f32.mxu0 0.0
        %1122 = vmatmul.mubr.f32.gmra.mrb[0].mxu0 %v983
        %v1123 = vpop.f32.mrb[0].mxu0
        %v1124 = vadd.f32 %v905, %v1123
        %v1125 = vpop.f32.mrb[0].mxu0
        %1126 = vmatprep.mubr.f32.mxu0 0.0
        %1127 = vmatmul.mubr.f32.gmra.mrb[0].mxu0 %v985
        %v1128 = vpop.f32.mrb[0].mxu0
        %v1129 = vadd.f32 %v906, %v1128
        %v1130 = vpop.f32.mrb[0].mxu0
        %1131 = vdwg.mxu0
        %v1132 = vmax.f32 %v1054, %v1074
        %v1133 = vmax.f32 %v1059, %v1079
        %v1134 = vmax.f32 %v1064, %v1084
        %v1135 = vmax.f32 %v1069, %v1089
        %v1136 = vmax.f32 %v1132, %v1094
        %v1137 = vmax.f32 %v1133, %v1099
        %v1138 = vmax.f32 %v1134, %v1104
        %v1139 = vmax.f32 %v1135, %v1109
        %v1140 = vmax.f32 %v1136, %v1114
        %v1141 = vmax.f32 %v1137, %v1119
        %v1142 = vmax.f32 %v1138, %v1124
        %v1143 = vmax.f32 %v1139, %v1129
        %v1144 = vmax.f32 %v1140, %v1141
        %v1145 = vmax.f32 %v1142, %v1143
        %v1146 = vmax.f32 %v1144, %v1145
        %1147 = vmax.xlane.f32.xlu0 %v1146
        %v1148 = vpop.xlane.xlu0 %1147
        %v1149 = vrot.slane %v1148, 4
        %v1150 = vmax.f32 %v1148, %v1149
        %v1151 = vrot.slane %v1150, 2
        %v1152 = vmax.f32 %v1150, %v1151
        %v1153 = vrot.slane %v1152, 1
        %v1154 = vmax.f32 %v1152, %v1153
        %s1155 = vtos %v1154
        %v1156 = vstv %s1155
        %v1157 = vsub.f32 %v1054, %v1156
        %v1158 = vsub.f32 %v1059, %v1156
        %v1159 = vsub.f32 %v1064, %v1156
        %v1160 = vsub.f32 %v1069, %v1156
        %v1161 = vsub.f32 %v1074, %v1156
        %v1162 = vsub.f32 %v1079, %v1156
        %v1163 = vsub.f32 %v1084, %v1156
        %v1164 = vsub.f32 %v1089, %v1156
        %v1165 = vsub.f32 %v1094, %v1156
        %v1166 = vsub.f32 %v1099, %v1156
        %v1167 = vsub.f32 %v1104, %v1156
        %v1168 = vsub.f32 %v1109, %v1156
        %v1169 = vsub.f32 %v1114, %v1156
        %v1170 = vsub.f32 %v1119, %v1156
        %v1171 = vsub.f32 %v1124, %v1156
        %v1172 = vsub.f32 %v1129, %v1156
        %v1173 = vmul.f32 %v1157, 1.442695
        %v1174 = vpow.pop %v1173
        %v1175 = vmul.f32 %v1158, 1.442695
        %v1176 = vpow.pop %v1175
        %v1177 = vmul.f32 %v1159, 1.442695
        %v1178 = vpow.pop %v1177
        %v1179 = vmul.f32 %v1160, 1.442695
        %v1180 = vpow.pop %v1179
        %v1181 = vmul.f32 %v1161, 1.442695
        %v1182 = vpow.pop %v1181
        %v1183 = vmul.f32 %v1162, 1.442695
        %v1184 = vpow.pop %v1183
        %v1185 = vmul.f32 %v1163, 1.442695
        %v1186 = vpow.pop %v1185
        %v1187 = vmul.f32 %v1164, 1.442695
        %v1188 = vpow.pop %v1187
        %v1189 = vmul.f32 %v1165, 1.442695
        %v1190 = vpow.pop %v1189
        %v1191 = vmul.f32 %v1166, 1.442695
        %v1192 = vpow.pop %v1191
        %v1193 = vmul.f32 %v1167, 1.442695
        %v1194 = vpow.pop %v1193
        %v1195 = vmul.f32 %v1168, 1.442695
        %v1196 = vpow.pop %v1195
        %v1197 = vmul.f32 %v1169, 1.442695
        %v1198 = vpow.pop %v1197
        %v1199 = vmul.f32 %v1170, 1.442695
        %v1200 = vpow.pop %v1199
        %v1201 = vmul.f32 %v1171, 1.442695
        %v1202 = vpow.pop %v1201
        %v1203 = vmul.f32 %v1172, 1.442695
        %v1204 = vpow.pop %v1203
        %v1205 = vadd.f32 %v1174, %v1176
        %v1206 = vadd.f32 %v1205, %v1178
        %v1207 = vadd.f32 %v1206, %v1180
        %v1208 = vadd.f32 %v1207, %v1182
        %v1209 = vadd.f32 %v1208, %v1184
        %v1210 = vadd.f32 %v1209, %v1186
        %v1211 = vadd.f32 %v1210, %v1188
        %v1212 = vadd.f32 %v1211, %v1190
        %v1213 = vadd.f32 %v1212, %v1192
        %v1214 = vadd.f32 %v1213, %v1194
        %v1215 = vadd.f32 %v1214, %v1196
        %v1216 = vadd.f32 %v1215, %v1198
        %v1217 = vadd.f32 %v1216, %v1200
        %v1218 = vadd.f32 %v1217, %v1202
        %v1219 = vadd.f32 %v1218, %v1204
        %1220 = vadd.xlane.f32.xlu0 %v1219
        %v1221 = vpop.xlane.xlu0 %1220
        %v1222 = vrot.slane %v1221, 4
        %v1223 = vadd.f32 %v1221, %v1222
        %v1224 = vrot.slane %v1223, 2
        %v1225 = vadd.f32 %v1223, %v1224
        %v1226 = vrot.slane %v1225, 1
        %v1227 = vadd.f32 %v1225, %v1226
        %s1228 = vtos %v1227
        %v1229 = vstv %s1228
        %v1230 = vrcp.pop %v1229
        %1231 = vxpose.xlu0.b32.start [1/16] %v1174, 128
        %1232 = vxpose.xlu0.b32.cont [2/16] %v1176, 128
        %1233 = vxpose.xlu0.b32.cont [3/16] %v1178, 128
        %1234 = vxpose.xlu0.b32.cont [4/16] %v1180, 128
        %1235 = vxpose.xlu0.b32.cont [5/16] %v1182, 128
        %1236 = vxpose.xlu0.b32.cont [6/16] %v1184, 128
        %1237 = vxpose.xlu0.b32.cont [7/16] %v1186, 128
        %1238 = vxpose.xlu0.b32.cont [8/16] %v1188, 128
        %1239 = vxpose.xlu0.b32.cont [9/16] %v1190, 128
        %1240 = vxpose.xlu0.b32.cont [10/16] %v1192, 128
        %1241 = vxpose.xlu0.b32.cont [11/16] %v1194, 128
        %1242 = vxpose.xlu0.b32.cont [12/16] %v1196, 128
        %1243 = vxpose.xlu0.b32.cont [13/16] %v1198, 128
        %1244 = vxpose.xlu0.b32.cont [14/16] %v1200, 128
        %1245 = vxpose.xlu0.b32.cont [15/16] %v1202, 128
        %1246 = vxpose.xlu0.b32.end [16/16] %v1204, 128
        %v1247 = vpop.trf.xlu0
        %v1248 = vpop.trf.xlu0
        %v1249 = vpop.trf.xlu0
        %v1250 = vpop.trf.xlu0
        %v1251 = vpop.trf.xlu0
        %v1252 = vpop.trf.xlu0
        %v1253 = vpop.trf.xlu0
        %v1254 = vpop.trf.xlu0
        %v1255 = vpop.trf.xlu0
        %v1256 = vpop.trf.xlu0
        %v1257 = vpop.trf.xlu0
        %v1258 = vpop.trf.xlu0
        %v1259 = vpop.trf.xlu0
        %v1260 = vpop.trf.xlu0
        %v1261 = vpop.trf.xlu0
        %v1262 = vpop.trf.xlu0
        %v1263 = vadd.f32 %v1174, %v1247
        %v1264 = vadd.f32 %v1176, %v1248
        %v1265 = vadd.f32 %v1178, %v1249
        %v1266 = vadd.f32 %v1180, %v1250
        %v1267 = vadd.f32 %v1182, %v1251
        %v1268 = vadd.f32 %v1184, %v1252
        %v1269 = vadd.f32 %v1186, %v1253
        %v1270 = vadd.f32 %v1188, %v1254
        %v1271 = vadd.f32 %v1190, %v1255
        %v1272 = vadd.f32 %v1192, %v1256
        %v1273 = vadd.f32 %v1194, %v1257
        %v1274 = vadd.f32 %v1196, %v1258
        %v1275 = vadd.f32 %v1198, %v1259
        %v1276 = vadd.f32 %v1200, %v1260
        %v1277 = vadd.f32 %v1202, %v1261
        %v1278 = vadd.f32 %v1204, %v1262
        %v1279 = vmul.f32 %v1263, %v1230
        %v1280 = vmul.f32 %v1264, %v1230
        %v1281 = vmul.f32 %v1265, %v1230
        %v1282 = vmul.f32 %v1266, %v1230
        %v1283 = vmul.f32 %v1267, %v1230
        %v1284 = vmul.f32 %v1268, %v1230
        %v1285 = vmul.f32 %v1269, %v1230
        %v1286 = vmul.f32 %v1270, %v1230
        %v1287 = vmul.f32 %v1271, %v1230
        %v1288 = vmul.f32 %v1272, %v1230
        %v1289 = vmul.f32 %v1273, %v1230
        %v1290 = vmul.f32 %v1274, %v1230
        %v1291 = vmul.f32 %v1275, %v1230
        %v1292 = vmul.f32 %v1276, %v1230
        %v1293 = vmul.f32 %v1277, %v1230
        %v1294 = vmul.f32 %v1278, %v1230
        %s1295 = scalar_lea.vmem %s269, 128 [#allocation9]
        %1296 = vst [vmem:[%s1295] sm:$0xff] %v1279
        %1297 = vst [vmem:[%s1295 + $0x8] sm:$0xff] %v1280
        %1298 = vst [vmem:[%s1295 + $0x10] sm:$0xff] %v1281
        %1299 = vst [vmem:[%s1295 + $0x18] sm:$0xff] %v1282
        %1300 = vst [vmem:[%s1295 + $0x20] sm:$0xff] %v1283
        %1301 = vst [vmem:[%s1295 + $0x28] sm:$0xff] %v1284
        %1302 = vst [vmem:[%s1295 + $0x30] sm:$0xff] %v1285
        %1303 = vst [vmem:[%s1295 + $0x38] sm:$0xff] %v1286
        %1304 = vst [vmem:[%s1295 + $0x40] sm:$0xff] %v1287
        %1305 = vst [vmem:[%s1295 + $0x48] sm:$0xff] %v1288
        %1306 = vst [vmem:[%s1295 + $0x50] sm:$0xff] %v1289
        %1307 = vst [vmem:[%s1295 + $0x58] sm:$0xff] %v1290
        %1308 = vst [vmem:[%s1295 + $0x60] sm:$0xff] %v1291
        %1309 = vst [vmem:[%s1295 + $0x68] sm:$0xff] %v1292
        %1310 = vst [vmem:[%s1295 + $0x70] sm:$0xff] %v1293
        %1311 = vst [vmem:[%s1295 + $0x78] sm:$0xff] %v1294
        %v1312 = vld [vmem:[#allocation2] sm:$0xff]
        %v1313 = vld [vmem:[#allocation2 + $0x8] sm:$0xff]
        %v1314 = vld [vmem:[#allocation2 + $0x10] sm:$0xff]
        %v1315 = vld [vmem:[#allocation2 + $0x18] sm:$0xff]
        %v1316 = vld [vmem:[#allocation2 + $0x20] sm:$0xff]
        %v1317 = vld [vmem:[#allocation2 + $0x28] sm:$0xff]
        %v1318 = vld [vmem:[#allocation2 + $0x30] sm:$0xff]
        %v1319 = vld [vmem:[#allocation2 + $0x38] sm:$0xff]
        %v1320 = vld [vmem:[#allocation2 + $0x40] sm:$0xff]
        %v1321 = vld [vmem:[#allocation2 + $0x48] sm:$0xff]
        %v1322 = vld [vmem:[#allocation2 + $0x50] sm:$0xff]
        %v1323 = vld [vmem:[#allocation2 + $0x58] sm:$0xff]
        %v1324 = vld [vmem:[#allocation2 + $0x60] sm:$0xff]
        %v1325 = vld [vmem:[#allocation2 + $0x68] sm:$0xff]
        %v1326 = vld [vmem:[#allocation2 + $0x70] sm:$0xff]
        %v1327 = vld [vmem:[#allocation2 + $0x78] sm:$0xff]
        %v1328 = vld [vmem:[%s236] sm:$0xff]
        %v1329 = vld [vmem:[%s236 + $0x8] sm:$0xff]
        %v1330 = vld [vmem:[%s236 + $0x10] sm:$0xff]
        %v1331 = vld [vmem:[%s236 + $0x18] sm:$0xff]
        %v1332 = vld [vmem:[%s236 + $0x20] sm:$0xff]
        %v1333 = vld [vmem:[%s236 + $0x28] sm:$0xff]
        %v1334 = vld [vmem:[%s236 + $0x30] sm:$0xff]
        %v1335 = vld [vmem:[%s236 + $0x38] sm:$0xff]
        %v1336 = vld [vmem:[%s236 + $0x40] sm:$0xff]
        %v1337 = vld [vmem:[%s236 + $0x48] sm:$0xff]
        %v1338 = vld [vmem:[%s236 + $0x50] sm:$0xff]
        %v1339 = vld [vmem:[%s236 + $0x58] sm:$0xff]
        %v1340 = vld [vmem:[%s236 + $0x60] sm:$0xff]
        %v1341 = vld [vmem:[%s236 + $0x68] sm:$0xff]
        %v1342 = vld [vmem:[%s236 + $0x70] sm:$0xff]
        %v1343 = vld [vmem:[%s236 + $0x78] sm:$0xff]
        %1360 = vrot.lane.b32.xlu0 %v1312, 64
        %v1361 = vpop.permute.xlu0 %1360
        %1362 = vrot.lane.b32.xlu0 %v1313, 64
        %v1363 = vpop.permute.xlu0 %1362
        %1364 = vrot.lane.b32.xlu0 %v1314, 64
        %v1365 = vpop.permute.xlu0 %1364
        %1366 = vrot.lane.b32.xlu0 %v1315, 64
        %v1367 = vpop.permute.xlu0 %1366
        %1368 = vrot.lane.b32.xlu0 %v1316, 64
        %v1369 = vpop.permute.xlu0 %1368
        %1370 = vrot.lane.b32.xlu0 %v1317, 64
        %v1371 = vpop.permute.xlu0 %1370
        %1372 = vrot.lane.b32.xlu0 %v1318, 64
        %v1373 = vpop.permute.xlu0 %1372
        %1374 = vrot.lane.b32.xlu0 %v1319, 64
        %v1375 = vpop.permute.xlu0 %1374
        %1376 = vrot.lane.b32.xlu0 %v1320, 64
        %v1377 = vpop.permute.xlu0 %1376
        %1378 = vrot.lane.b32.xlu0 %v1321, 64
        %v1379 = vpop.permute.xlu0 %1378
        %1380 = vrot.lane.b32.xlu0 %v1322, 64
        %v1381 = vpop.permute.xlu0 %1380
        %1382 = vrot.lane.b32.xlu0 %v1323, 64
        %v1383 = vpop.permute.xlu0 %1382
        %1384 = vrot.lane.b32.xlu0 %v1324, 64
        %v1385 = vpop.permute.xlu0 %1384
        %1386 = vrot.lane.b32.xlu0 %v1325, 64
        %v1387 = vpop.permute.xlu0 %1386
        %1388 = vrot.lane.b32.xlu0 %v1326, 64
        %v1389 = vpop.permute.xlu0 %1388
        %1390 = vrot.lane.b32.xlu0 %v1327, 64
        %v1391 = vpop.permute.xlu0 %1390
        %v1392 = vsel %vm502, %v1361, 0
        %v1394 = vsel %vm502, %v1363, 0
        %v1396 = vsel %vm502, %v1365, 0
        %v1398 = vsel %vm502, %v1367, 0
        %v1400 = vsel %vm502, %v1369, 0
        %v1402 = vsel %vm502, %v1371, 0
        %v1404 = vsel %vm502, %v1373, 0
        %v1406 = vsel %vm502, %v1375, 0
        %v1408 = vsel %vm502, %v1377, 0
        %v1410 = vsel %vm502, %v1379, 0
        %v1412 = vsel %vm502, %v1381, 0
        %v1414 = vsel %vm502, %v1383, 0
        %v1416 = vsel %vm502, %v1385, 0
        %v1418 = vsel %vm502, %v1387, 0
        %v1420 = vsel %vm502, %v1389, 0
        %v1422 = vsel %vm502, %v1391, 0
        %1424 = vmatprep.subr.mxu0 0.0
        %1425 = vmatpush1.xpose.msra.mxu0 %v1392
        %1426 = vmatprep.subr.mxu0 0.0
        %1427 = vmatpush1.xpose.msra.mxu0 %v1394
        %1428 = vmatprep.subr.mxu0 0.0
        %1429 = vmatpush1.xpose.msra.mxu0 %v1396
        %1430 = vmatprep.subr.mxu0 0.0
        %1431 = vmatpush1.xpose.msra.mxu0 %v1398
        %1432 = vmatprep.subr.mxu0 0.0
        %1433 = vmatpush1.xpose.msra.mxu0 %v1400
        %1434 = vmatprep.subr.mxu0 0.0
        %1435 = vmatpush1.xpose.msra.mxu0 %v1402
        %1436 = vmatprep.subr.mxu0 0.0
        %1437 = vmatpush1.xpose.msra.mxu0 %v1404
        %1438 = vmatprep.subr.mxu0 0.0
        %1439 = vmatpush1.xpose.msra.mxu0 %v1406
        %1440 = vmatprep.subr.mxu0 0.0
        %1441 = vmatpush1.xpose.msra.mxu0 %v1408
        %1442 = vmatprep.subr.mxu0 0.0
        %1443 = vmatpush1.xpose.msra.mxu0 %v1410
        %1444 = vmatprep.subr.mxu0 0.0
        %1445 = vmatpush1.xpose.msra.mxu0 %v1412
        %1446 = vmatprep.subr.mxu0 0.0
        %1447 = vmatpush1.xpose.msra.mxu0 %v1414
        %1448 = vmatprep.subr.mxu0 0.0
        %1449 = vmatpush1.xpose.msra.mxu0 %v1416
        %1450 = vmatprep.subr.mxu0 0.0
        %1451 = vmatpush1.xpose.msra.mxu0 %v1418
        %1452 = vmatprep.subr.mxu0 0.0
        %1453 = vmatpush1.xpose.msra.mxu0 %v1420
        %1454 = vmatprep.subr.mxu0 0.0
        %1455 = vmatpush1.xpose.msra.mxu0 %v1422
        %1456 = vmatprep.subr.mxu0 0.0
        %1457 = vmatpush1.xpose.msra.mxu0 0.0
        %1458 = vmatprep.subr.mxu0 0.0
        %1459 = vmatpush1.xpose.msra.mxu0 0.0
        %1460 = vmatprep.subr.mxu0 0.0
        %1461 = vmatpush1.xpose.msra.mxu0 0.0
        %1462 = vmatprep.subr.mxu0 0.0
        %1463 = vmatpush1.xpose.msra.mxu0 0.0
        %1464 = vmatprep.subr.mxu0 0.0
        %1465 = vmatpush1.xpose.msra.mxu0 0.0
        %1466 = vmatprep.subr.mxu0 0.0
        %1467 = vmatpush1.xpose.msra.mxu0 0.0
        %1468 = vmatprep.subr.mxu0 0.0
        %1469 = vmatpush1.xpose.msra.mxu0 0.0
        %1470 = vmatprep.subr.mxu0 0.0
        %1471 = vmatpush1.xpose.msra.mxu0 0.0
        %1472 = vmatprep.subr.mxu0 0.0
        %1473 = vmatpush1.xpose.msra.mxu0 0.0
        %1474 = vmatprep.subr.mxu0 0.0
        %1475 = vmatpush1.xpose.msra.mxu0 0.0
        %1476 = vmatprep.subr.mxu0 0.0
        %1477 = vmatpush1.xpose.msra.mxu0 0.0
        %1478 = vmatprep.subr.mxu0 0.0
        %1479 = vmatpush1.xpose.msra.mxu0 0.0
        %1480 = vmatprep.subr.mxu0 0.0
        %1481 = vmatpush1.xpose.msra.mxu0 0.0
        %1482 = vmatprep.subr.mxu0 0.0
        %1483 = vmatpush1.xpose.msra.mxu0 0.0
        %1484 = vmatprep.subr.mxu0 0.0
        %1485 = vmatpush1.xpose.msra.mxu0 0.0
        %1486 = vmatprep.subr.mxu0 0.0
        %1487 = vmatpush1.xpose.msra.mxu0 0.0
        %1488 = vmatprep.mubr.f32.mxu0 0.0
        %1489 = vmatmul.mubr.f32.gmra.mrb[0].mxu0 %v1392
        %v1490 = vpop.f32.mrb[0].mxu0
        %v1491 = vadd.f32 %v1328, %v1490
        %v1492 = vpop.f32.mrb[0].mxu0
        %1493 = vmatprep.mubr.f32.mxu0 0.0
        %1494 = vmatmul.mubr.f32.gmra.mrb[0].mxu0 %v1394
        %v1495 = vpop.f32.mrb[0].mxu0
        %v1496 = vadd.f32 %v1329, %v1495
        %v1497 = vpop.f32.mrb[0].mxu0
        %1498 = vmatprep.mubr.f32.mxu0 0.0
        %1499 = vmatmul.mubr.f32.gmra.mrb[0].mxu0 %v1396
        %v1500 = vpop.f32.mrb[0].mxu0
        %v1501 = vadd.f32 %v1330, %v1500
        %v1502 = vpop.f32.mrb[0].mxu0
        %1503 = vmatprep.mubr.f32.mxu0 0.0
        %1504 = vmatmul.mubr.f32.gmra.mrb[0].mxu0 %v1398
        %v1505 = vpop.f32.mrb[0].mxu0
        %v1506 = vadd.f32 %v1331, %v1505
        %v1507 = vpop.f32.mrb[0].mxu0
        %1508 = vmatprep.mubr.f32.mxu0 0.0
        %1509 = vmatmul.mubr.f32.gmra.mrb[0].mxu0 %v1400
        %v1510 = vpop.f32.mrb[0].mxu0
        %v1511 = vadd.f32 %v1332, %v1510
        %v1512 = vpop.f32.mrb[0].mxu0
        %1513 = vmatprep.mubr.f32.mxu0 0.0
        %1514 = vmatmul.mubr.f32.gmra.mrb[0].mxu0 %v1402
        %v1515 = vpop.f32.mrb[0].mxu0
        %v1516 = vadd.f32 %v1333, %v1515
        %v1517 = vpop.f32.mrb[0].mxu0
        %1518 = vmatprep.mubr.f32.mxu0 0.0
        %1519 = vmatmul.mubr.f32.gmra.mrb[0].mxu0 %v1404
        %v1520 = vpop.f32.mrb[0].mxu0
        %v1521 = vadd.f32 %v1334, %v1520
        %v1522 = vpop.f32.mrb[0].mxu0
        %1523 = vmatprep.mubr.f32.mxu0 0.0
        %1524 = vmatmul.mubr.f32.gmra.mrb[0].mxu0 %v1406
        %v1525 = vpop.f32.mrb[0].mxu0
        %v1526 = vadd.f32 %v1335, %v1525
        %v1527 = vpop.f32.mrb[0].mxu0
        %1528 = vmatprep.mubr.f32.mxu0 0.0
        %1529 = vmatmul.mubr.f32.gmra.mrb[0].mxu0 %v1408
        %v1530 = vpop.f32.mrb[0].mxu0
        %v1531 = vadd.f32 %v1336, %v1530
        %v1532 = vpop.f32.mrb[0].mxu0
        %1533 = vmatprep.mubr.f32.mxu0 0.0
        %1534 = vmatmul.mubr.f32.gmra.mrb[0].mxu0 %v1410
        %v1535 = vpop.f32.mrb[0].mxu0
        %v1536 = vadd.f32 %v1337, %v1535
        %v1537 = vpop.f32.mrb[0].mxu0
        %1538 = vmatprep.mubr.f32.mxu0 0.0
        %1539 = vmatmul.mubr.f32.gmra.mrb[0].mxu0 %v1412
        %v1540 = vpop.f32.mrb[0].mxu0
        %v1541 = vadd.f32 %v1338, %v1540
        %v1542 = vpop.f32.mrb[0].mxu0
        %1543 = vmatprep.mubr.f32.mxu0 0.0
        %1544 = vmatmul.mubr.f32.gmra.mrb[0].mxu0 %v1414
        %v1545 = vpop.f32.mrb[0].mxu0
        %v1546 = vadd.f32 %v1339, %v1545
        %v1547 = vpop.f32.mrb[0].mxu0
        %1548 = vmatprep.mubr.f32.mxu0 0.0
        %1549 = vmatmul.mubr.f32.gmra.mrb[0].mxu0 %v1416
        %v1550 = vpop.f32.mrb[0].mxu0
        %v1551 = vadd.f32 %v1340, %v1550
        %v1552 = vpop.f32.mrb[0].mxu0
        %1553 = vmatprep.mubr.f32.mxu0 0.0
        %1554 = vmatmul.mubr.f32.gmra.mrb[0].mxu0 %v1418
        %v1555 = vpop.f32.mrb[0].mxu0
        %v1556 = vadd.f32 %v1341, %v1555
        %v1557 = vpop.f32.mrb[0].mxu0
        %1558 = vmatprep.mubr.f32.mxu0 0.0
        %1559 = vmatmul.mubr.f32.gmra.mrb[0].mxu0 %v1420
        %v1560 = vpop.f32.mrb[0].mxu0
        %v1561 = vadd.f32 %v1342, %v1560
        %v1562 = vpop.f32.mrb[0].mxu0
        %1563 = vmatprep.mubr.f32.mxu0 0.0
        %1564 = vmatmul.mubr.f32.gmra.mrb[0].mxu0 %v1422
        %v1565 = vpop.f32.mrb[0].mxu0
        %v1566 = vadd.f32 %v1343, %v1565
        %v1567 = vpop.f32.mrb[0].mxu0
        %1568 = vdwg.mxu0
        %v1569 = vmax.f32 %v1491, %v1511
        %v1570 = vmax.f32 %v1496, %v1516
        %v1571 = vmax.f32 %v1501, %v1521
        %v1572 = vmax.f32 %v1506, %v1526
        %v1573 = vmax.f32 %v1569, %v1531
        %v1574 = vmax.f32 %v1570, %v1536
        %v1575 = vmax.f32 %v1571, %v1541
        %v1576 = vmax.f32 %v1572, %v1546
        %v1577 = vmax.f32 %v1573, %v1551
        %v1578 = vmax.f32 %v1574, %v1556
        %v1579 = vmax.f32 %v1575, %v1561
        %v1580 = vmax.f32 %v1576, %v1566
        %v1581 = vmax.f32 %v1577, %v1578
        %v1582 = vmax.f32 %v1579, %v1580
        %v1583 = vmax.f32 %v1581, %v1582
        %1584 = vmax.xlane.f32.xlu0 %v1583
        %v1585 = vpop.xlane.xlu0 %1584
        %v1586 = vrot.slane %v1585, 4
        %v1587 = vmax.f32 %v1585, %v1586
        %v1588 = vrot.slane %v1587, 2
        %v1589 = vmax.f32 %v1587, %v1588
        %v1590 = vrot.slane %v1589, 1
        %v1591 = vmax.f32 %v1589, %v1590
        %s1592 = vtos %v1591
        %v1593 = vstv %s1592
        %v1594 = vsub.f32 %v1491, %v1593
        %v1595 = vsub.f32 %v1496, %v1593
        %v1596 = vsub.f32 %v1501, %v1593
        %v1597 = vsub.f32 %v1506, %v1593
        %v1598 = vsub.f32 %v1511, %v1593
        %v1599 = vsub.f32 %v1516, %v1593
        %v1600 = vsub.f32 %v1521, %v1593
        %v1601 = vsub.f32 %v1526, %v1593
        %v1602 = vsub.f32 %v1531, %v1593
        %v1603 = vsub.f32 %v1536, %v1593
        %v1604 = vsub.f32 %v1541, %v1593
        %v1605 = vsub.f32 %v1546, %v1593
        %v1606 = vsub.f32 %v1551, %v1593
        %v1607 = vsub.f32 %v1556, %v1593
        %v1608 = vsub.f32 %v1561, %v1593
        %v1609 = vsub.f32 %v1566, %v1593
        %v1610 = vmul.f32 %v1594, 1.442695
        %v1611 = vpow.pop %v1610
        %v1612 = vmul.f32 %v1595, 1.442695
        %v1613 = vpow.pop %v1612
        %v1614 = vmul.f32 %v1596, 1.442695
        %v1615 = vpow.pop %v1614
        %v1616 = vmul.f32 %v1597, 1.442695
        %v1617 = vpow.pop %v1616
        %v1618 = vmul.f32 %v1598, 1.442695
        %v1619 = vpow.pop %v1618
        %v1620 = vmul.f32 %v1599, 1.442695
        %v1621 = vpow.pop %v1620
        %v1622 = vmul.f32 %v1600, 1.442695
        %v1623 = vpow.pop %v1622
        %v1624 = vmul.f32 %v1601, 1.442695
        %v1625 = vpow.pop %v1624
        %v1626 = vmul.f32 %v1602, 1.442695
        %v1627 = vpow.pop %v1626
        %v1628 = vmul.f32 %v1603, 1.442695
        %v1629 = vpow.pop %v1628
        %v1630 = vmul.f32 %v1604, 1.442695
        %v1631 = vpow.pop %v1630
        %v1632 = vmul.f32 %v1605, 1.442695
        %v1633 = vpow.pop %v1632
        %v1634 = vmul.f32 %v1606, 1.442695
        %v1635 = vpow.pop %v1634
        %v1636 = vmul.f32 %v1607, 1.442695
        %v1637 = vpow.pop %v1636
        %v1638 = vmul.f32 %v1608, 1.442695
        %v1639 = vpow.pop %v1638
        %v1640 = vmul.f32 %v1609, 1.442695
        %v1641 = vpow.pop %v1640
        %v1642 = vadd.f32 %v1611, %v1613
        %v1643 = vadd.f32 %v1642, %v1615
        %v1644 = vadd.f32 %v1643, %v1617
        %v1645 = vadd.f32 %v1644, %v1619
        %v1646 = vadd.f32 %v1645, %v1621
        %v1647 = vadd.f32 %v1646, %v1623
        %v1648 = vadd.f32 %v1647, %v1625
        %v1649 = vadd.f32 %v1648, %v1627
        %v1650 = vadd.f32 %v1649, %v1629
        %v1651 = vadd.f32 %v1650, %v1631
        %v1652 = vadd.f32 %v1651, %v1633
        %v1653 = vadd.f32 %v1652, %v1635
        %v1654 = vadd.f32 %v1653, %v1637
        %v1655 = vadd.f32 %v1654, %v1639
        %v1656 = vadd.f32 %v1655, %v1641
        %1657 = vadd.xlane.f32.xlu0 %v1656
        %v1658 = vpop.xlane.xlu0 %1657
        %v1659 = vrot.slane %v1658, 4
        %v1660 = vadd.f32 %v1658, %v1659
        %v1661 = vrot.slane %v1660, 2
        %v1662 = vadd.f32 %v1660, %v1661
        %v1663 = vrot.slane %v1662, 1
        %v1664 = vadd.f32 %v1662, %v1663
        %s1665 = vtos %v1664
        %v1666 = vstv %s1665
        %v1667 = vrcp.pop %v1666
        %1668 = vxpose.xlu0.b32.start [1/16] %v1611, 128
        %1669 = vxpose.xlu0.b32.cont [2/16] %v1613, 128
        %1670 = vxpose.xlu0.b32.cont [3/16] %v1615, 128
        %1671 = vxpose.xlu0.b32.cont [4/16] %v1617, 128
        %1672 = vxpose.xlu0.b32.cont [5/16] %v1619, 128
        %1673 = vxpose.xlu0.b32.cont [6/16] %v1621, 128
        %1674 = vxpose.xlu0.b32.cont [7/16] %v1623, 128
        %1675 = vxpose.xlu0.b32.cont [8/16] %v1625, 128
        %1676 = vxpose.xlu0.b32.cont [9/16] %v1627, 128
        %1677 = vxpose.xlu0.b32.cont [10/16] %v1629, 128
        %1678 = vxpose.xlu0.b32.cont [11/16] %v1631, 128
        %1679 = vxpose.xlu0.b32.cont [12/16] %v1633, 128
        %1680 = vxpose.xlu0.b32.cont [13/16] %v1635, 128
        %1681 = vxpose.xlu0.b32.cont [14/16] %v1637, 128
        %1682 = vxpose.xlu0.b32.cont [15/16] %v1639, 128
        %1683 = vxpose.xlu0.b32.end [16/16] %v1641, 128
        %v1684 = vpop.trf.xlu0
        %v1685 = vpop.trf.xlu0
        %v1686 = vpop.trf.xlu0
        %v1687 = vpop.trf.xlu0
        %v1688 = vpop.trf.xlu0
        %v1689 = vpop.trf.xlu0
        %v1690 = vpop.trf.xlu0
        %v1691 = vpop.trf.xlu0
        %v1692 = vpop.trf.xlu0
        %v1693 = vpop.trf.xlu0
        %v1694 = vpop.trf.xlu0
        %v1695 = vpop.trf.xlu0
        %v1696 = vpop.trf.xlu0
        %v1697 = vpop.trf.xlu0
        %v1698 = vpop.trf.xlu0
        %v1699 = vpop.trf.xlu0
        %v1700 = vadd.f32 %v1611, %v1684
        %v1701 = vadd.f32 %v1613, %v1685
        %v1702 = vadd.f32 %v1615, %v1686
        %v1703 = vadd.f32 %v1617, %v1687
        %v1704 = vadd.f32 %v1619, %v1688
        %v1705 = vadd.f32 %v1621, %v1689
        %v1706 = vadd.f32 %v1623, %v1690
        %v1707 = vadd.f32 %v1625, %v1691
        %v1708 = vadd.f32 %v1627, %v1692
        %v1709 = vadd.f32 %v1629, %v1693
        %v1710 = vadd.f32 %v1631, %v1694
        %v1711 = vadd.f32 %v1633, %v1695
        %v1712 = vadd.f32 %v1635, %v1696
        %v1713 = vadd.f32 %v1637, %v1697
        %v1714 = vadd.f32 %v1639, %v1698
        %v1715 = vadd.f32 %v1641, %v1699
        %v1716 = vmul.f32 %v1700, %v1667
        %v1717 = vmul.f32 %v1701, %v1667
        %v1718 = vmul.f32 %v1702, %v1667
        %v1719 = vmul.f32 %v1703, %v1667
        %v1720 = vmul.f32 %v1704, %v1667
        %v1721 = vmul.f32 %v1705, %v1667
        %v1722 = vmul.f32 %v1706, %v1667
        %v1723 = vmul.f32 %v1707, %v1667
        %v1724 = vmul.f32 %v1708, %v1667
        %v1725 = vmul.f32 %v1709, %v1667
        %v1726 = vmul.f32 %v1710, %v1667
        %v1727 = vmul.f32 %v1711, %v1667
        %v1728 = vmul.f32 %v1712, %v1667
        %v1729 = vmul.f32 %v1713, %v1667
        %v1730 = vmul.f32 %v1714, %v1667
        %v1731 = vmul.f32 %v1715, %v1667
        %s1732 = scalar_lea.vmem %s269, 256 [#allocation9]
        %1733 = vst [vmem:[%s1732] sm:$0xff] %v1716
        %1734 = vst [vmem:[%s1732 + $0x8] sm:$0xff] %v1717
        %1735 = vst [vmem:[%s1732 + $0x10] sm:$0xff] %v1718
        %1736 = vst [vmem:[%s1732 + $0x18] sm:$0xff] %v1719
        %1737 = vst [vmem:[%s1732 + $0x20] sm:$0xff] %v1720
        %1738 = vst [vmem:[%s1732 + $0x28] sm:$0xff] %v1721
        %1739 = vst [vmem:[%s1732 + $0x30] sm:$0xff] %v1722
        %1740 = vst [vmem:[%s1732 + $0x38] sm:$0xff] %v1723
        %1741 = vst [vmem:[%s1732 + $0x40] sm:$0xff] %v1724
        %1742 = vst [vmem:[%s1732 + $0x48] sm:$0xff] %v1725
        %1743 = vst [vmem:[%s1732 + $0x50] sm:$0xff] %v1726
        %1744 = vst [vmem:[%s1732 + $0x58] sm:$0xff] %v1727
        %1745 = vst [vmem:[%s1732 + $0x60] sm:$0xff] %v1728
        %1746 = vst [vmem:[%s1732 + $0x68] sm:$0xff] %v1729
        %1747 = vst [vmem:[%s1732 + $0x70] sm:$0xff] %v1730
        %1748 = vst [vmem:[%s1732 + $0x78] sm:$0xff] %v1731
        %v1749 = vld [vmem:[#allocation2] sm:$0xff]
        %v1750 = vld [vmem:[#allocation2 + $0x8] sm:$0xff]
        %v1751 = vld [vmem:[#allocation2 + $0x10] sm:$0xff]
        %v1752 = vld [vmem:[#allocation2 + $0x18] sm:$0xff]
        %v1753 = vld [vmem:[#allocation2 + $0x20] sm:$0xff]
        %v1754 = vld [vmem:[#allocation2 + $0x28] sm:$0xff]
        %v1755 = vld [vmem:[#allocation2 + $0x30] sm:$0xff]
        %v1756 = vld [vmem:[#allocation2 + $0x38] sm:$0xff]
        %v1757 = vld [vmem:[#allocation2 + $0x40] sm:$0xff]
        %v1758 = vld [vmem:[#allocation2 + $0x48] sm:$0xff]
        %v1759 = vld [vmem:[#allocation2 + $0x50] sm:$0xff]
        %v1760 = vld [vmem:[#allocation2 + $0x58] sm:$0xff]
        %v1761 = vld [vmem:[#allocation2 + $0x60] sm:$0xff]
        %v1762 = vld [vmem:[#allocation2 + $0x68] sm:$0xff]
        %v1763 = vld [vmem:[#allocation2 + $0x70] sm:$0xff]
        %v1764 = vld [vmem:[#allocation2 + $0x78] sm:$0xff]
        %v1765 = vld [vmem:[%s236] sm:$0xff]
        %v1766 = vld [vmem:[%s236 + $0x8] sm:$0xff]
        %v1767 = vld [vmem:[%s236 + $0x10] sm:$0xff]
        %v1768 = vld [vmem:[%s236 + $0x18] sm:$0xff]
        %v1769 = vld [vmem:[%s236 + $0x20] sm:$0xff]
        %v1770 = vld [vmem:[%s236 + $0x28] sm:$0xff]
        %v1771 = vld [vmem:[%s236 + $0x30] sm:$0xff]
        %v1772 = vld [vmem:[%s236 + $0x38] sm:$0xff]
        %v1773 = vld [vmem:[%s236 + $0x40] sm:$0xff]
        %v1774 = vld [vmem:[%s236 + $0x48] sm:$0xff]
        %v1775 = vld [vmem:[%s236 + $0x50] sm:$0xff]
        %v1776 = vld [vmem:[%s236 + $0x58] sm:$0xff]
        %v1777 = vld [vmem:[%s236 + $0x60] sm:$0xff]
        %v1778 = vld [vmem:[%s236 + $0x68] sm:$0xff]
        %v1779 = vld [vmem:[%s236 + $0x70] sm:$0xff]
        %v1780 = vld [vmem:[%s236 + $0x78] sm:$0xff]
        %1797 = vrot.lane.b32.xlu0 %v1749, 32
        %v1798 = vpop.permute.xlu0 %1797
        %1799 = vrot.lane.b32.xlu0 %v1750, 32
        %v1800 = vpop.permute.xlu0 %1799
        %1801 = vrot.lane.b32.xlu0 %v1751, 32
        %v1802 = vpop.permute.xlu0 %1801
        %1803 = vrot.lane.b32.xlu0 %v1752, 32
        %v1804 = vpop.permute.xlu0 %1803
        %1805 = vrot.lane.b32.xlu0 %v1753, 32
        %v1806 = vpop.permute.xlu0 %1805
        %1807 = vrot.lane.b32.xlu0 %v1754, 32
        %v1808 = vpop.permute.xlu0 %1807
        %1809 = vrot.lane.b32.xlu0 %v1755, 32
        %v1810 = vpop.permute.xlu0 %1809
        %1811 = vrot.lane.b32.xlu0 %v1756, 32
        %v1812 = vpop.permute.xlu0 %1811
        %1813 = vrot.lane.b32.xlu0 %v1757, 32
        %v1814 = vpop.permute.xlu0 %1813
        %1815 = vrot.lane.b32.xlu0 %v1758, 32
        %v1816 = vpop.permute.xlu0 %1815
        %1817 = vrot.lane.b32.xlu0 %v1759, 32
        %v1818 = vpop.permute.xlu0 %1817
        %1819 = vrot.lane.b32.xlu0 %v1760, 32
        %v1820 = vpop.permute.xlu0 %1819
        %1821 = vrot.lane.b32.xlu0 %v1761, 32
        %v1822 = vpop.permute.xlu0 %1821
        %1823 = vrot.lane.b32.xlu0 %v1762, 32
        %v1824 = vpop.permute.xlu0 %1823
        %1825 = vrot.lane.b32.xlu0 %v1763, 32
        %v1826 = vpop.permute.xlu0 %1825
        %1827 = vrot.lane.b32.xlu0 %v1764, 32
        %v1828 = vpop.permute.xlu0 %1827
        %v1829 = vsel %vm502, %v1798, 0
        %v1831 = vsel %vm502, %v1800, 0
        %v1833 = vsel %vm502, %v1802, 0
        %v1835 = vsel %vm502, %v1804, 0
        %v1837 = vsel %vm502, %v1806, 0
        %v1839 = vsel %vm502, %v1808, 0
        %v1841 = vsel %vm502, %v1810, 0
        %v1843 = vsel %vm502, %v1812, 0
        %v1845 = vsel %vm502, %v1814, 0
        %v1847 = vsel %vm502, %v1816, 0
        %v1849 = vsel %vm502, %v1818, 0
        %v1851 = vsel %vm502, %v1820, 0
        %v1853 = vsel %vm502, %v1822, 0
        %v1855 = vsel %vm502, %v1824, 0
        %v1857 = vsel %vm502, %v1826, 0
        %v1859 = vsel %vm502, %v1828, 0
        %1861 = vmatprep.subr.mxu0 0.0
        %1862 = vmatpush1.xpose.msra.mxu0 %v1829
        %1863 = vmatprep.subr.mxu0 0.0
        %1864 = vmatpush1.xpose.msra.mxu0 %v1831
        %1865 = vmatprep.subr.mxu0 0.0
        %1866 = vmatpush1.xpose.msra.mxu0 %v1833
        %1867 = vmatprep.subr.mxu0 0.0
        %1868 = vmatpush1.xpose.msra.mxu0 %v1835
        %1869 = vmatprep.subr.mxu0 0.0
        %1870 = vmatpush1.xpose.msra.mxu0 %v1837
        %1871 = vmatprep.subr.mxu0 0.0
        %1872 = vmatpush1.xpose.msra.mxu0 %v1839
        %1873 = vmatprep.subr.mxu0 0.0
        %1874 = vmatpush1.xpose.msra.mxu0 %v1841
        %1875 = vmatprep.subr.mxu0 0.0
        %1876 = vmatpush1.xpose.msra.mxu0 %v1843
        %1877 = vmatprep.subr.mxu0 0.0
        %1878 = vmatpush1.xpose.msra.mxu0 %v1845
        %1879 = vmatprep.subr.mxu0 0.0
        %1880 = vmatpush1.xpose.msra.mxu0 %v1847
        %1881 = vmatprep.subr.mxu0 0.0
        %1882 = vmatpush1.xpose.msra.mxu0 %v1849
        %1883 = vmatprep.subr.mxu0 0.0
        %1884 = vmatpush1.xpose.msra.mxu0 %v1851
        %1885 = vmatprep.subr.mxu0 0.0
        %1886 = vmatpush1.xpose.msra.mxu0 %v1853
        %1887 = vmatprep.subr.mxu0 0.0
        %1888 = vmatpush1.xpose.msra.mxu0 %v1855
        %1889 = vmatprep.subr.mxu0 0.0
        %1890 = vmatpush1.xpose.msra.mxu0 %v1857
        %1891 = vmatprep.subr.mxu0 0.0
        %1892 = vmatpush1.xpose.msra.mxu0 %v1859
        %1893 = vmatprep.subr.mxu0 0.0
        %1894 = vmatpush1.xpose.msra.mxu0 0.0
        %1895 = vmatprep.subr.mxu0 0.0
        %1896 = vmatpush1.xpose.msra.mxu0 0.0
        %1897 = vmatprep.subr.mxu0 0.0
        %1898 = vmatpush1.xpose.msra.mxu0 0.0
        %1899 = vmatprep.subr.mxu0 0.0
        %1900 = vmatpush1.xpose.msra.mxu0 0.0
        %1901 = vmatprep.subr.mxu0 0.0
        %1902 = vmatpush1.xpose.msra.mxu0 0.0
        %1903 = vmatprep.subr.mxu0 0.0
        %1904 = vmatpush1.xpose.msra.mxu0 0.0
        %1905 = vmatprep.subr.mxu0 0.0
        %1906 = vmatpush1.xpose.msra.mxu0 0.0
        %1907 = vmatprep.subr.mxu0 0.0
        %1908 = vmatpush1.xpose.msra.mxu0 0.0
        %1909 = vmatprep.subr.mxu0 0.0
        %1910 = vmatpush1.xpose.msra.mxu0 0.0
        %1911 = vmatprep.subr.mxu0 0.0
        %1912 = vmatpush1.xpose.msra.mxu0 0.0
        %1913 = vmatprep.subr.mxu0 0.0
        %1914 = vmatpush1.xpose.msra.mxu0 0.0
        %1915 = vmatprep.subr.mxu0 0.0
        %1916 = vmatpush1.xpose.msra.mxu0 0.0
        %1917 = vmatprep.subr.mxu0 0.0
        %1918 = vmatpush1.xpose.msra.mxu0 0.0
        %1919 = vmatprep.subr.mxu0 0.0
        %1920 = vmatpush1.xpose.msra.mxu0 0.0
        %1921 = vmatprep.subr.mxu0 0.0
        %1922 = vmatpush1.xpose.msra.mxu0 0.0
        %1923 = vmatprep.subr.mxu0 0.0
        %1924 = vmatpush1.xpose.msra.mxu0 0.0
        %1925 = vmatprep.mubr.f32.mxu0 0.0
        %1926 = vmatmul.mubr.f32.gmra.mrb[0].mxu0 %v1829
        %v1927 = vpop.f32.mrb[0].mxu0
        %v1928 = vadd.f32 %v1765, %v1927
        %v1929 = vpop.f32.mrb[0].mxu0
        %1930 = vmatprep.mubr.f32.mxu0 0.0
        %1931 = vmatmul.mubr.f32.gmra.mrb[0].mxu0 %v1831
        %v1932 = vpop.f32.mrb[0].mxu0
        %v1933 = vadd.f32 %v1766, %v1932
        %v1934 = vpop.f32.mrb[0].mxu0
        %1935 = vmatprep.mubr.f32.mxu0 0.0
        %1936 = vmatmul.mubr.f32.gmra.mrb[0].mxu0 %v1833
        %v1937 = vpop.f32.mrb[0].mxu0
        %v1938 = vadd.f32 %v1767, %v1937
        %v1939 = vpop.f32.mrb[0].mxu0
        %1940 = vmatprep.mubr.f32.mxu0 0.0
        %1941 = vmatmul.mubr.f32.gmra.mrb[0].mxu0 %v1835
        %v1942 = vpop.f32.mrb[0].mxu0
        %v1943 = vadd.f32 %v1768, %v1942
        %v1944 = vpop.f32.mrb[0].mxu0
        %1945 = vmatprep.mubr.f32.mxu0 0.0
        %1946 = vmatmul.mubr.f32.gmra.mrb[0].mxu0 %v1837
        %v1947 = vpop.f32.mrb[0].mxu0
        %v1948 = vadd.f32 %v1769, %v1947
        %v1949 = vpop.f32.mrb[0].mxu0
        %1950 = vmatprep.mubr.f32.mxu0 0.0
        %1951 = vmatmul.mubr.f32.gmra.mrb[0].mxu0 %v1839
        %v1952 = vpop.f32.mrb[0].mxu0
        %v1953 = vadd.f32 %v1770, %v1952
        %v1954 = vpop.f32.mrb[0].mxu0
        %1955 = vmatprep.mubr.f32.mxu0 0.0
        %1956 = vmatmul.mubr.f32.gmra.mrb[0].mxu0 %v1841
        %v1957 = vpop.f32.mrb[0].mxu0
        %v1958 = vadd.f32 %v1771, %v1957
        %v1959 = vpop.f32.mrb[0].mxu0
        %1960 = vmatprep.mubr.f32.mxu0 0.0
        %1961 = vmatmul.mubr.f32.gmra.mrb[0].mxu0 %v1843
        %v1962 = vpop.f32.mrb[0].mxu0
        %v1963 = vadd.f32 %v1772, %v1962
        %v1964 = vpop.f32.mrb[0].mxu0
        %1965 = vmatprep.mubr.f32.mxu0 0.0
        %1966 = vmatmul.mubr.f32.gmra.mrb[0].mxu0 %v1845
        %v1967 = vpop.f32.mrb[0].mxu0
        %v1968 = vadd.f32 %v1773, %v1967
        %v1969 = vpop.f32.mrb[0].mxu0
        %1970 = vmatprep.mubr.f32.mxu0 0.0
        %1971 = vmatmul.mubr.f32.gmra.mrb[0].mxu0 %v1847
        %v1972 = vpop.f32.mrb[0].mxu0
        %v1973 = vadd.f32 %v1774, %v1972
        %v1974 = vpop.f32.mrb[0].mxu0
        %1975 = vmatprep.mubr.f32.mxu0 0.0
        %1976 = vmatmul.mubr.f32.gmra.mrb[0].mxu0 %v1849
        %v1977 = vpop.f32.mrb[0].mxu0
        %v1978 = vadd.f32 %v1775, %v1977
        %v1979 = vpop.f32.mrb[0].mxu0
        %1980 = vmatprep.mubr.f32.mxu0 0.0
        %1981 = vmatmul.mubr.f32.gmra.mrb[0].mxu0 %v1851
        %v1982 = vpop.f32.mrb[0].mxu0
        %v1983 = vadd.f32 %v1776, %v1982
        %v1984 = vpop.f32.mrb[0].mxu0
        %1985 = vmatprep.mubr.f32.mxu0 0.0
        %1986 = vmatmul.mubr.f32.gmra.mrb[0].mxu0 %v1853
        %v1987 = vpop.f32.mrb[0].mxu0
        %v1988 = vadd.f32 %v1777, %v1987
        %v1989 = vpop.f32.mrb[0].mxu0
        %1990 = vmatprep.mubr.f32.mxu0 0.0
        %1991 = vmatmul.mubr.f32.gmra.mrb[0].mxu0 %v1855
        %v1992 = vpop.f32.mrb[0].mxu0
        %v1993 = vadd.f32 %v1778, %v1992
        %v1994 = vpop.f32.mrb[0].mxu0
        %1995 = vmatprep.mubr.f32.mxu0 0.0
        %1996 = vmatmul.mubr.f32.gmra.mrb[0].mxu0 %v1857
        %v1997 = vpop.f32.mrb[0].mxu0
        %v1998 = vadd.f32 %v1779, %v1997
        %v1999 = vpop.f32.mrb[0].mxu0
        %2000 = vmatprep.mubr.f32.mxu0 0.0
        %2001 = vmatmul.mubr.f32.gmra.mrb[0].mxu0 %v1859
        %v2002 = vpop.f32.mrb[0].mxu0
        %v2003 = vadd.f32 %v1780, %v2002
        %v2004 = vpop.f32.mrb[0].mxu0
        %2005 = vdwg.mxu0
        %v2006 = vmax.f32 %v1928, %v1948
        %v2007 = vmax.f32 %v1933, %v1953
        %v2008 = vmax.f32 %v1938, %v1958
        %v2009 = vmax.f32 %v1943, %v1963
        %v2010 = vmax.f32 %v2006, %v1968
        %v2011 = vmax.f32 %v2007, %v1973
        %v2012 = vmax.f32 %v2008, %v1978
        %v2013 = vmax.f32 %v2009, %v1983
        %v2014 = vmax.f32 %v2010, %v1988
        %v2015 = vmax.f32 %v2011, %v1993
        %v2016 = vmax.f32 %v2012, %v1998
        %v2017 = vmax.f32 %v2013, %v2003
        %v2018 = vmax.f32 %v2014, %v2015
        %v2019 = vmax.f32 %v2016, %v2017
        %v2020 = vmax.f32 %v2018, %v2019
        %2021 = vmax.xlane.f32.xlu0 %v2020
        %v2022 = vpop.xlane.xlu0 %2021
        %v2023 = vrot.slane %v2022, 4
        %v2024 = vmax.f32 %v2022, %v2023
        %v2025 = vrot.slane %v2024, 2
        %v2026 = vmax.f32 %v2024, %v2025
        %v2027 = vrot.slane %v2026, 1
        %v2028 = vmax.f32 %v2026, %v2027
        %s2029 = vtos %v2028
        %v2030 = vstv %s2029
        %v2031 = vsub.f32 %v1928, %v2030
        %v2032 = vsub.f32 %v1933, %v2030
        %v2033 = vsub.f32 %v1938, %v2030
        %v2034 = vsub.f32 %v1943, %v2030
        %v2035 = vsub.f32 %v1948, %v2030
        %v2036 = vsub.f32 %v1953, %v2030
        %v2037 = vsub.f32 %v1958, %v2030
        %v2038 = vsub.f32 %v1963, %v2030
        %v2039 = vsub.f32 %v1968, %v2030
        %v2040 = vsub.f32 %v1973, %v2030
        %v2041 = vsub.f32 %v1978, %v2030
        %v2042 = vsub.f32 %v1983, %v2030
        %v2043 = vsub.f32 %v1988, %v2030
        %v2044 = vsub.f32 %v1993, %v2030
        %v2045 = vsub.f32 %v1998, %v2030
        %v2046 = vsub.f32 %v2003, %v2030
        %v2047 = vmul.f32 %v2031, 1.442695
        %v2048 = vpow.pop %v2047
        %v2049 = vmul.f32 %v2032, 1.442695
        %v2050 = vpow.pop %v2049
        %v2051 = vmul.f32 %v2033, 1.442695
        %v2052 = vpow.pop %v2051
        %v2053 = vmul.f32 %v2034, 1.442695
        %v2054 = vpow.pop %v2053
        %v2055 = vmul.f32 %v2035, 1.442695
        %v2056 = vpow.pop %v2055
        %v2057 = vmul.f32 %v2036, 1.442695
        %v2058 = vpow.pop %v2057
        %v2059 = vmul.f32 %v2037, 1.442695
        %v2060 = vpow.pop %v2059
        %v2061 = vmul.f32 %v2038, 1.442695
        %v2062 = vpow.pop %v2061
        %v2063 = vmul.f32 %v2039, 1.442695
        %v2064 = vpow.pop %v2063
        %v2065 = vmul.f32 %v2040, 1.442695
        %v2066 = vpow.pop %v2065
        %v2067 = vmul.f32 %v2041, 1.442695
        %v2068 = vpow.pop %v2067
        %v2069 = vmul.f32 %v2042, 1.442695
        %v2070 = vpow.pop %v2069
        %v2071 = vmul.f32 %v2043, 1.442695
        %v2072 = vpow.pop %v2071
        %v2073 = vmul.f32 %v2044, 1.442695
        %v2074 = vpow.pop %v2073
        %v2075 = vmul.f32 %v2045, 1.442695
        %v2076 = vpow.pop %v2075
        %v2077 = vmul.f32 %v2046, 1.442695
        %v2078 = vpow.pop %v2077
        %v2079 = vadd.f32 %v2048, %v2050
        %v2080 = vadd.f32 %v2079, %v2052
        %v2081 = vadd.f32 %v2080, %v2054
        %v2082 = vadd.f32 %v2081, %v2056
        %v2083 = vadd.f32 %v2082, %v2058
        %v2084 = vadd.f32 %v2083, %v2060
        %v2085 = vadd.f32 %v2084, %v2062
        %v2086 = vadd.f32 %v2085, %v2064
        %v2087 = vadd.f32 %v2086, %v2066
        %v2088 = vadd.f32 %v2087, %v2068
        %v2089 = vadd.f32 %v2088, %v2070
        %v2090 = vadd.f32 %v2089, %v2072
        %v2091 = vadd.f32 %v2090, %v2074
        %v2092 = vadd.f32 %v2091, %v2076
        %v2093 = vadd.f32 %v2092, %v2078
        %2094 = vadd.xlane.f32.xlu0 %v2093
        %v2095 = vpop.xlane.xlu0 %2094
        %v2096 = vrot.slane %v2095, 4
        %v2097 = vadd.f32 %v2095, %v2096
        %v2098 = vrot.slane %v2097, 2
        %v2099 = vadd.f32 %v2097, %v2098
        %v2100 = vrot.slane %v2099, 1
        %v2101 = vadd.f32 %v2099, %v2100
        %s2102 = vtos %v2101
        %v2103 = vstv %s2102
        %v2104 = vrcp.pop %v2103
        %2105 = vxpose.xlu0.b32.start [1/16] %v2048, 128
        %2106 = vxpose.xlu0.b32.cont [2/16] %v2050, 128
        %2107 = vxpose.xlu0.b32.cont [3/16] %v2052, 128
        %2108 = vxpose.xlu0.b32.cont [4/16] %v2054, 128
        %2109 = vxpose.xlu0.b32.cont [5/16] %v2056, 128
        %2110 = vxpose.xlu0.b32.cont [6/16] %v2058, 128
        %2111 = vxpose.xlu0.b32.cont [7/16] %v2060, 128
        %2112 = vxpose.xlu0.b32.cont [8/16] %v2062, 128
        %2113 = vxpose.xlu0.b32.cont [9/16] %v2064, 128
        %2114 = vxpose.xlu0.b32.cont [10/16] %v2066, 128
        %2115 = vxpose.xlu0.b32.cont [11/16] %v2068, 128
        %2116 = vxpose.xlu0.b32.cont [12/16] %v2070, 128
        %2117 = vxpose.xlu0.b32.cont [13/16] %v2072, 128
        %2118 = vxpose.xlu0.b32.cont [14/16] %v2074, 128
        %2119 = vxpose.xlu0.b32.cont [15/16] %v2076, 128
        %2120 = vxpose.xlu0.b32.end [16/16] %v2078, 128
        %v2121 = vpop.trf.xlu0
        %v2122 = vpop.trf.xlu0
        %v2123 = vpop.trf.xlu0
        %v2124 = vpop.trf.xlu0
        %v2125 = vpop.trf.xlu0
        %v2126 = vpop.trf.xlu0
        %v2127 = vpop.trf.xlu0
        %v2128 = vpop.trf.xlu0
        %v2129 = vpop.trf.xlu0
        %v2130 = vpop.trf.xlu0
        %v2131 = vpop.trf.xlu0
        %v2132 = vpop.trf.xlu0
        %v2133 = vpop.trf.xlu0
        %v2134 = vpop.trf.xlu0
        %v2135 = vpop.trf.xlu0
        %v2136 = vpop.trf.xlu0
        %v2137 = vadd.f32 %v2048, %v2121
        %v2138 = vadd.f32 %v2050, %v2122
        %v2139 = vadd.f32 %v2052, %v2123
        %v2140 = vadd.f32 %v2054, %v2124
        %v2141 = vadd.f32 %v2056, %v2125
        %v2142 = vadd.f32 %v2058, %v2126
        %v2143 = vadd.f32 %v2060, %v2127
        %v2144 = vadd.f32 %v2062, %v2128
        %v2145 = vadd.f32 %v2064, %v2129
        %v2146 = vadd.f32 %v2066, %v2130
        %v2147 = vadd.f32 %v2068, %v2131
        %v2148 = vadd.f32 %v2070, %v2132
        %v2149 = vadd.f32 %v2072, %v2133
        %v2150 = vadd.f32 %v2074, %v2134
        %v2151 = vadd.f32 %v2076, %v2135
        %v2152 = vadd.f32 %v2078, %v2136
        %v2153 = vmul.f32 %v2137, %v2104
        %v2154 = vmul.f32 %v2138, %v2104
        %v2155 = vmul.f32 %v2139, %v2104
        %v2156 = vmul.f32 %v2140, %v2104
        %v2157 = vmul.f32 %v2141, %v2104
        %v2158 = vmul.f32 %v2142, %v2104
        %v2159 = vmul.f32 %v2143, %v2104
        %v2160 = vmul.f32 %v2144, %v2104
        %v2161 = vmul.f32 %v2145, %v2104
        %v2162 = vmul.f32 %v2146, %v2104
        %v2163 = vmul.f32 %v2147, %v2104
        %v2164 = vmul.f32 %v2148, %v2104
        %v2165 = vmul.f32 %v2149, %v2104
        %v2166 = vmul.f32 %v2150, %v2104
        %v2167 = vmul.f32 %v2151, %v2104
        %v2168 = vmul.f32 %v2152, %v2104
        %s2169 = scalar_lea.vmem %s269, 384 [#allocation9]
        %2170 = vst [vmem:[%s2169] sm:$0xff] %v2153
        %2171 = vst [vmem:[%s2169 + $0x8] sm:$0xff] %v2154
        %2172 = vst [vmem:[%s2169 + $0x10] sm:$0xff] %v2155
        %2173 = vst [vmem:[%s2169 + $0x18] sm:$0xff] %v2156
        %2174 = vst [vmem:[%s2169 + $0x20] sm:$0xff] %v2157
        %2175 = vst [vmem:[%s2169 + $0x28] sm:$0xff] %v2158
        %2176 = vst [vmem:[%s2169 + $0x30] sm:$0xff] %v2159
        %2177 = vst [vmem:[%s2169 + $0x38] sm:$0xff] %v2160
        %2178 = vst [vmem:[%s2169 + $0x40] sm:$0xff] %v2161
        %2179 = vst [vmem:[%s2169 + $0x48] sm:$0xff] %v2162
        %2180 = vst [vmem:[%s2169 + $0x50] sm:$0xff] %v2163
        %2181 = vst [vmem:[%s2169 + $0x58] sm:$0xff] %v2164
        %2182 = vst [vmem:[%s2169 + $0x60] sm:$0xff] %v2165
        %2183 = vst [vmem:[%s2169 + $0x68] sm:$0xff] %v2166
        %2184 = vst [vmem:[%s2169 + $0x70] sm:$0xff] %v2167
        %2185 = vst [vmem:[%s2169 + $0x78] sm:$0xff] %v2168
        %s2186 = sand.u32 %s126, 1
        %s2187 = scalar_lea.sflag [#allocation5], %s2186
        %s2188 = sand.u32 %s126, 1
        %s2189 = smul.addr %s2188, 512
        %s2190 = scalar_lea.vmem [#allocation9], %s2189
        // Predicated region
        $region49: #{tpu_custom_call.1} parent=35 // pred_check
          %p2191 = pneg %p136
        $region50: #{tpu_custom_call.1} parent=35 // pred_check_branch
          %2193 = sbr.rel (%p2191) target = $region52
        $region51: #{tpu_custom_call.1} parent=35 // pred_region
          %s2195 = ssub.s32 8192, 8192
          %2196 = vsyncadd %s2187, %s2195
          %s2197 = smul.addr %s24, 64
          %s2198 = smul.addr %s2197, 128
          %s2199 = scalar_lea.hbm %s4, %s2198
          %s2200 = sshll.u32 %s2190, 4
          %s2201 = int_to_ptr.vmem [resolvable:$true] %s2200
          %2206 = dma.vmem_to_hbm [thread:$0]  %s2201, 8192, %s2199, %s2187, 128, 128, 8
        $region52: #{tpu_custom_call.1} parent=35 // pred_fallthru
          _
      $region36: #{tpu_custom_call.1} parent=5 // pred_fallthru
        _
      %p2207 = scmp.le.s32.totalorder 2, %s19
      // Predicated region
      $region53: #{tpu_custom_call.1} parent=5 // pred_check
        %p2208 = pneg %p2207
      $region54: #{tpu_custom_call.1} parent=5 // pred_check_branch
        %2210 = sbr.rel (%p2208) target = $region56
      $region55: #{tpu_custom_call.1} parent=5 // pred_region
        %s2211 = ssub.s32 %s19, 2
        // Predicated region
        $region57: #{tpu_custom_call.1} parent=55 // pred_check
          %p2212 = pneg %p142
        $region58: #{tpu_custom_call.1} parent=55 // pred_check_branch
          %2214 = sbr.rel (%p2212) target = $region60
        $region59: #{tpu_custom_call.1} parent=55 // pred_region
          %s2215 = sand.u32 %s127, 1
          %s2216 = scalar_lea.sflag [#allocation5], %s2215
          %s2217 = sand.u32 %s127, 1
          %s2218 = smul.addr %s2217, 512
          %s2219 = scalar_lea.vmem [#allocation9], %s2218
          %2220 = dma.done %s2216, 8192
        $region60: #{tpu_custom_call.1} parent=55 // pred_fallthru
          _
      $region56: #{tpu_custom_call.1} parent=5 // pred_fallthru
        _
    $region6: #{tpu_custom_call.1} parent=1 // loop_footer
      %s23 = sadd.s32 1, %s19
    $region7: #{tpu_custom_call.1} parent=1 // loop_footer_branch
      %18 = sbr.rel target = $region3
    $region8: #{tpu_custom_call.1} parent=1 // loop_exit
      _
    %2221 = vsyncpa [#allocation4], 1
    %s2222 = scalar_lea.sflag [#allocation4], 1
    %2223 = vsyncpa %s2222, 1
    %2224 = vsyncpa [#allocation7], 1
    %s2225 = scalar_lea.sflag [#allocation7], 1
    %2226 = vsyncpa %s2225, 1
    %2227 = vsyncpa [#allocation5], 1
    %s2228 = scalar_lea.sflag [#allocation5], 1
    %2229 = vsyncpa %s2228, 1

</llo_original>
